<compile_context>
chip_gen: v7x
topology: tpu7x:2x2x1
jax: 0.10.0
libtpu: 0.0.40
codegen_flags: <defaults>
</compile_context>

<pallas_src>
import math
import jax
import jax.numpy as jnp
from jax.experimental import pallas as pl
from jax.experimental.pallas import tpu as pltpu


def _gelu(y):
    # Exact tanh-GeLU polynomial from the PyTorch module.
    return 0.5 * y * (1.0 + jnp.tanh(y * 0.7978845608 * (1.0 + 0.044715 * y * y)))


def full_fusion_kernel(x_ref, a_ref,
                       w1x_ref, w1a_ref, b1_ref,
                       w2x_ref, w2a_ref, b2_ref,
                       w3x_ref, w3a_ref, b3_ref,
                       wf1_ref, wf2_ref, wf3_ref, bf_ref,
                       o_ref):
    # x_ref / a_ref: (TM, D) row tile of x / align.
    # w*x/w*a: (D, Hp) normalized, pre-transposed weight slabs. wf*: (Hp, Hp). b*: (1, Hp).
    x = x_ref[...]
    a = a_ref[...]

    # fusion1( cat([x, align]) )
    y1 = (jnp.dot(x, w1x_ref[...], preferred_element_type=jnp.float32)
          + jnp.dot(a, w1a_ref[...], preferred_element_type=jnp.float32)
          + b1_ref[...])
    h1 = _gelu(y1)

    # fusion2( cat([x, x - align]) )
    y2 = (jnp.dot(x, w2x_ref[...], preferred_element_type=jnp.float32)
          + jnp.dot(x - a, w2a_ref[...], preferred_element_type=jnp.float32)
          + b2_ref[...])
    h2 = _gelu(y2)

    # fusion3( cat([x, x * align]) )
    y3 = (jnp.dot(x, w3x_ref[...], preferred_element_type=jnp.float32)
          + jnp.dot(x * a, w3a_ref[...], preferred_element_type=jnp.float32)
          + b3_ref[...])
    h3 = _gelu(y3)

    # final fusion( cat([h1, h2, h3]) ); dropout is identity in inference mode.
    y = (jnp.dot(h1, wf1_ref[...], preferred_element_type=jnp.float32)
         + jnp.dot(h2, wf2_ref[...], preferred_element_type=jnp.float32)
         + jnp.dot(h3, wf3_ref[...], preferred_element_type=jnp.float32)
         + bf_ref[...])
    o_ref[...] = _gelu(y).astype(o_ref.dtype)


def _weight_norm_t(v, g):
    # PyTorch weight_norm(dim=0): W[o,:] = g[o] * v[o,:] / ||v[o,:]||.  Return W^T -> (K, H).
    norm = jnp.sqrt(jnp.sum(v * v, axis=1, keepdims=True))
    return (v * (g[:, None] / norm)).T


def _pad_cols(w, pad):
    return w if pad == 0 else jnp.pad(w, ((0, 0), (0, pad)))


def full_fusion_forward(x, align, params, *, tm_max=512):
    """x, align: (B, S, D).  params: v*/g*/b* in PyTorch layout.  Returns (B, S, H)."""
    B, S, D = x.shape
    H = params["b1"].shape[0]
    LANE = 128
    H_pad = ((H + LANE - 1) // LANE) * LANE
    pad = H_pad - H

    # --- one-time weight prep (tiny): weight-norm, transpose to (K, N), split concat slabs.
    w1 = _weight_norm_t(params["v1"], params["g1"])   # (2D, H)
    w2 = _weight_norm_t(params["v2"], params["g2"])
    w3 = _weight_norm_t(params["v3"], params["g3"])
    wf = _weight_norm_t(params["vf"], params["gf"])   # (3H, H)

    w1x, w1a = _pad_cols(w1[:D], pad), _pad_cols(w1[D:], pad)
    w2x, w2a = _pad_cols(w2[:D], pad), _pad_cols(w2[D:], pad)
    w3x, w3a = _pad_cols(w3[:D], pad), _pad_cols(w3[D:], pad)
    wf1 = jnp.pad(wf[:H],       ((0, pad), (0, pad)))
    wf2 = jnp.pad(wf[H:2 * H],  ((0, pad), (0, pad)))
    wf3 = jnp.pad(wf[2 * H:],   ((0, pad), (0, pad)))
    b1 = jnp.pad(params["b1"], (0, pad)).reshape(1, H_pad)
    b2 = jnp.pad(params["b2"], (0, pad)).reshape(1, H_pad)
    b3 = jnp.pad(params["b3"], (0, pad)).reshape(1, H_pad)
    bf = jnp.pad(params["bf"], (0, pad)).reshape(1, H_pad)

    R = B * S
    x2d = x.reshape(R, D)
    a2d = align.reshape(R, D)

    # Row tiling: big tiles for pipelining; small problems collapse to a single full block.
    TM = tm_max if R >= tm_max else R
    grid = (pl.cdiv(R, TM),)

    row_spec = pl.BlockSpec((TM, D), lambda i: (i, 0))
    out_spec = pl.BlockSpec((TM, H_pad), lambda i: (i, 0))
    wD_spec = pl.BlockSpec((D, H_pad), lambda i: (0, 0))        # VMEM-resident weights
    wH_spec = pl.BlockSpec((H_pad, H_pad), lambda i: (0, 0))
    b_spec = pl.BlockSpec((1, H_pad), lambda i: (0, 0))

    flops = 2 * R * (3 * (2 * D) * H_pad + 3 * H_pad * H_pad)
    bytes_accessed = 4 * (2 * R * D + R * H_pad
                          + 6 * D * H_pad + 3 * H_pad * H_pad + 4 * H_pad)
    cost = pl.CostEstimate(flops=flops,
                           transcendentals=4 * R * H_pad,
                           bytes_accessed=bytes_accessed)

    out = pl.pallas_call(
        full_fusion_kernel,
        out_shape=jax.ShapeDtypeStruct((R, H_pad), jnp.float32),
        grid_spec=pltpu.PrefetchScalarGridSpec(
            num_scalar_prefetch=0,
            grid=grid,
            in_specs=[
                row_spec, row_spec,
                wD_spec, wD_spec, b_spec,
                wD_spec, wD_spec, b_spec,
                wD_spec, wD_spec, b_spec,
                wH_spec, wH_spec, wH_spec, b_spec,
            ],
            out_specs=out_spec,
        ),
        compiler_params=pltpu.CompilerParams(
            dimension_semantics=("parallel",),
            vmem_limit_bytes=48 * 1024 * 1024),
        cost_estimate=cost,
    )(x2d, a2d,
      w1x, w1a, b1,
      w2x, w2a, b2,
      w3x, w3a, b3,
      wf1, wf2, wf3, bf)

    if pad:
        out = out[:, :H]
    return out.reshape(B, S, H)


def reference_forward(x, align, params):
    def lin(v, g, b, inp):
        norm = jnp.sqrt(jnp.sum(v * v, axis=1, keepdims=True))
        w = v * (g[:, None] / norm)
        return _gelu(inp @ w.T + b)

    x1 = lin(params["v1"], params["g1"], params["b1"], jnp.concatenate([x, align], -1))
    x2 = lin(params["v2"], params["g2"], params["b2"], jnp.concatenate([x, x - align], -1))
    x3 = lin(params["v3"], params["g3"], params["b3"], jnp.concatenate([x, x * align], -1))
    h = jnp.concatenate([x1, x2, x3], -1)
    return lin(params["vf"], params["gf"], params["bf"], h)


if __name__ == "__main__":
    # Small shapes consistent with the module: (batch, seq, input_size), args.hidden_size.
    B, S, D, H = 2, 8, 64, 64

    key = jax.random.PRNGKey(0)
    ks = jax.random.split(key, 6)
    x = jax.random.normal(ks[0], (B, S, D), dtype=jnp.float32)
    align = jax.random.normal(ks[1], (B, S, D), dtype=jnp.float32)

    # Parameter init mirroring the PyTorch module:
    #   nn.init.normal_(weight, std=sqrt(2/in_features)); bias = 0;
    #   weight_norm init: v = weight, g = per-output-row L2 norm of weight.
    def init_linear(k, in_f, out_f):
        v = jax.random.normal(k, (out_f, in_f), dtype=jnp.float32) * math.sqrt(2.0 / in_f)
        g = jnp.sqrt(jnp.sum(v * v, axis=1))
        b = jnp.zeros((out_f,), dtype=jnp.float32)
        return v, g, b

    v1, g1, b1 = init_linear(ks[2], 2 * D, H)
    v2, g2, b2 = init_linear(ks[3], 2 * D, H)
    v3, g3, b3 = init_linear(ks[4], 2 * D, H)
    vf, gf, bf = init_linear(ks[5], 3 * H, H)

    params = dict(v1=v1, g1=g1, b1=b1, v2=v2, g2=g2, b2=b2,
                  v3=v3, g3=g3, b3=b3, vf=vf, gf=gf, bf=bf)

    out = full_fusion_forward(x, align, params)
    jax.block_until_ready(out)

    ref = reference_forward(x, align, params)
    assert out.shape == (B, S, H)
    assert jnp.allclose(out, ref, atol=2e-4, rtol=2e-4), float(jnp.max(jnp.abs(out - ref)))
    print("KERNEL_OK")
</pallas_src>

<mosaic_0001>
module attributes {stable_mosaic.version = 11 : i64} {
  func.func @full_fusion_kernel(%arg0: i32, %arg1: memref<16x64xf32, #tpu.memory_space<vmem>>, %arg2: memref<16x64xf32, #tpu.memory_space<vmem>>, %arg3: memref<64x128xf32, #tpu.memory_space<vmem>>, %arg4: memref<64x128xf32, #tpu.memory_space<vmem>>, %arg5: memref<1x128xf32, #tpu.memory_space<vmem>>, %arg6: memref<64x128xf32, #tpu.memory_space<vmem>>, %arg7: memref<64x128xf32, #tpu.memory_space<vmem>>, %arg8: memref<1x128xf32, #tpu.memory_space<vmem>>, %arg9: memref<64x128xf32, #tpu.memory_space<vmem>>, %arg10: memref<64x128xf32, #tpu.memory_space<vmem>>, %arg11: memref<1x128xf32, #tpu.memory_space<vmem>>, %arg12: memref<128x128xf32, #tpu.memory_space<vmem>>, %arg13: memref<128x128xf32, #tpu.memory_space<vmem>>, %arg14: memref<128x128xf32, #tpu.memory_space<vmem>>, %arg15: memref<1x128xf32, #tpu.memory_space<vmem>>, %arg16: memref<16x128xf32, #tpu.memory_space<vmem>>) attributes {dimension_semantics = [#tpu.dimension_semantics<parallel>], iteration_bounds = array<i64: 1>, scalar_prefetch = 0 : i64, scratch_operands = 0 : i64, tpu.core_type = #tpu.core_type<tc>, window_params = [{transform_indices = @transform_0, window_bounds = array<i64: 16, 64>}, {transform_indices = @transform_1, window_bounds = array<i64: 16, 64>}, {pipeline_mode = #tpu.pipeline_mode<synchronous>, transform_indices = @transform_2, window_bounds = array<i64: 64, 128>}, {pipeline_mode = #tpu.pipeline_mode<synchronous>, transform_indices = @transform_3, window_bounds = array<i64: 64, 128>}, {pipeline_mode = #tpu.pipeline_mode<synchronous>, transform_indices = @transform_4, window_bounds = array<i64: 1, 128>}, {pipeline_mode = #tpu.pipeline_mode<synchronous>, transform_indices = @transform_5, window_bounds = array<i64: 64, 128>}, {pipeline_mode = #tpu.pipeline_mode<synchronous>, transform_indices = @transform_6, window_bounds = array<i64: 64, 128>}, {pipeline_mode = #tpu.pipeline_mode<synchronous>, transform_indices = @transform_7, window_bounds = array<i64: 1, 128>}, {pipeline_mode = #tpu.pipeline_mode<synchronous>, transform_indices = @transform_8, window_bounds = array<i64: 64, 128>}, {pipeline_mode = #tpu.pipeline_mode<synchronous>, transform_indices = @transform_9, window_bounds = array<i64: 64, 128>}, {pipeline_mode = #tpu.pipeline_mode<synchronous>, transform_indices = @transform_10, window_bounds = array<i64: 1, 128>}, {pipeline_mode = #tpu.pipeline_mode<synchronous>, transform_indices = @transform_11, window_bounds = array<i64: 128, 128>}, {pipeline_mode = #tpu.pipeline_mode<synchronous>, transform_indices = @transform_12, window_bounds = array<i64: 128, 128>}, {pipeline_mode = #tpu.pipeline_mode<synchronous>, transform_indices = @transform_13, window_bounds = array<i64: 128, 128>}, {pipeline_mode = #tpu.pipeline_mode<synchronous>, transform_indices = @transform_14, window_bounds = array<i64: 1, 128>}, {transform_indices = @transform_15, window_bounds = array<i64: 16, 128>}]} {
    %c0 = arith.constant 0 : index
    %c0_0 = arith.constant 0 : index
    %0 = vector.load %arg1[%c0, %c0_0] : memref<16x64xf32, #tpu.memory_space<vmem>>, vector<16x64xf32>
    %c0_1 = arith.constant 0 : index
    %c0_2 = arith.constant 0 : index
    %1 = vector.load %arg2[%c0_1, %c0_2] : memref<16x64xf32, #tpu.memory_space<vmem>>, vector<16x64xf32>
    %c0_3 = arith.constant 0 : index
    %c0_4 = arith.constant 0 : index
    %2 = vector.load %arg3[%c0_3, %c0_4] : memref<64x128xf32, #tpu.memory_space<vmem>>, vector<64x128xf32>
    %cst = arith.constant dense<0.000000e+00> : vector<16x128xf32>
    %3 = tpu.matmul %0, %2, %cst {dimension_numbers = #tpu.dot_dimension_numbers<[1], [0], [0], [1], [0, 0, 1, 1], [], []>} : vector<16x64xf32>, vector<64x128xf32>, vector<16x128xf32> -> vector<16x128xf32>
    %c0_5 = arith.constant 0 : index
    %c0_6 = arith.constant 0 : index
    %4 = vector.load %arg4[%c0_5, %c0_6] : memref<64x128xf32, #tpu.memory_space<vmem>>, vector<64x128xf32>
    %cst_7 = arith.constant dense<0.000000e+00> : vector<16x128xf32>
    %5 = tpu.matmul %1, %4, %cst_7 {dimension_numbers = #tpu.dot_dimension_numbers<[1], [0], [0], [1], [0, 0, 1, 1], [], []>} : vector<16x64xf32>, vector<64x128xf32>, vector<16x128xf32> -> vector<16x128xf32>
    %6 = arith.addf %3, %5 : vector<16x128xf32>
    %c0_8 = arith.constant 0 : index
    %c0_9 = arith.constant 0 : index
    %7 = vector.load %arg5[%c0_8, %c0_9] : memref<1x128xf32, #tpu.memory_space<vmem>>, vector<1x128xf32>
    %8 = vector.broadcast %7 : vector<1x128xf32> to vector<16x128xf32>
    %9 = arith.addf %6, %8 : vector<16x128xf32>
    %cst_10 = arith.constant 5.000000e-01 : f32
    %10 = vector.broadcast %cst_10 : f32 to vector<16x128xf32>
    %11 = arith.mulf %10, %9 : vector<16x128xf32>
    %cst_11 = arith.constant 0.797884583 : f32
    %12 = vector.broadcast %cst_11 : f32 to vector<16x128xf32>
    %13 = arith.mulf %9, %12 : vector<16x128xf32>
    %cst_12 = arith.constant 4.471500e-02 : f32
    %14 = vector.broadcast %cst_12 : f32 to vector<16x128xf32>
    %15 = arith.mulf %14, %9 : vector<16x128xf32>
    %16 = arith.mulf %15, %9 : vector<16x128xf32>
    %cst_13 = arith.constant 1.000000e+00 : f32
    %17 = vector.broadcast %cst_13 : f32 to vector<16x128xf32>
    %18 = arith.addf %17, %16 : vector<16x128xf32>
    %19 = arith.mulf %13, %18 : vector<16x128xf32>
    %20 = math.tanh %19 : vector<16x128xf32>
    %cst_14 = arith.constant 1.000000e+00 : f32
    %21 = vector.broadcast %cst_14 : f32 to vector<16x128xf32>
    %22 = arith.addf %21, %20 : vector<16x128xf32>
    %23 = arith.mulf %11, %22 : vector<16x128xf32>
    %c0_15 = arith.constant 0 : index
    %c0_16 = arith.constant 0 : index
    %24 = vector.load %arg6[%c0_15, %c0_16] : memref<64x128xf32, #tpu.memory_space<vmem>>, vector<64x128xf32>
    %cst_17 = arith.constant dense<0.000000e+00> : vector<16x128xf32>
    %25 = tpu.matmul %0, %24, %cst_17 {dimension_numbers = #tpu.dot_dimension_numbers<[1], [0], [0], [1], [0, 0, 1, 1], [], []>} : vector<16x64xf32>, vector<64x128xf32>, vector<16x128xf32> -> vector<16x128xf32>
    %26 = arith.subf %0, %1 : vector<16x64xf32>
    %c0_18 = arith.constant 0 : index
    %c0_19 = arith.constant 0 : index
    %27 = vector.load %arg7[%c0_18, %c0_19] : memref<64x128xf32, #tpu.memory_space<vmem>>, vector<64x128xf32>
    %cst_20 = arith.constant dense<0.000000e+00> : vector<16x128xf32>
    %28 = tpu.matmul %26, %27, %cst_20 {dimension_numbers = #tpu.dot_dimension_numbers<[1], [0], [0], [1], [0, 0, 1, 1], [], []>} : vector<16x64xf32>, vector<64x128xf32>, vector<16x128xf32> -> vector<16x128xf32>
    %29 = arith.addf %25, %28 : vector<16x128xf32>
    %c0_21 = arith.constant 0 : index
    %c0_22 = arith.constant 0 : index
    %30 = vector.load %arg8[%c0_21, %c0_22] : memref<1x128xf32, #tpu.memory_space<vmem>>, vector<1x128xf32>
    %31 = vector.broadcast %30 : vector<1x128xf32> to vector<16x128xf32>
    %32 = arith.addf %29, %31 : vector<16x128xf32>
    %cst_23 = arith.constant 5.000000e-01 : f32
    %33 = vector.broadcast %cst_23 : f32 to vector<16x128xf32>
    %34 = arith.mulf %33, %32 : vector<16x128xf32>
    %cst_24 = arith.constant 0.797884583 : f32
    %35 = vector.broadcast %cst_24 : f32 to vector<16x128xf32>
    %36 = arith.mulf %32, %35 : vector<16x128xf32>
    %cst_25 = arith.constant 4.471500e-02 : f32
    %37 = vector.broadcast %cst_25 : f32 to vector<16x128xf32>
    %38 = arith.mulf %37, %32 : vector<16x128xf32>
    %39 = arith.mulf %38, %32 : vector<16x128xf32>
    %cst_26 = arith.constant 1.000000e+00 : f32
    %40 = vector.broadcast %cst_26 : f32 to vector<16x128xf32>
    %41 = arith.addf %40, %39 : vector<16x128xf32>
    %42 = arith.mulf %36, %41 : vector<16x128xf32>
    %43 = math.tanh %42 : vector<16x128xf32>
    %cst_27 = arith.constant 1.000000e+00 : f32
    %44 = vector.broadcast %cst_27 : f32 to vector<16x128xf32>
    %45 = arith.addf %44, %43 : vector<16x128xf32>
    %46 = arith.mulf %34, %45 : vector<16x128xf32>
    %c0_28 = arith.constant 0 : index
    %c0_29 = arith.constant 0 : index
    %47 = vector.load %arg9[%c0_28, %c0_29] : memref<64x128xf32, #tpu.memory_space<vmem>>, vector<64x128xf32>
    %cst_30 = arith.constant dense<0.000000e+00> : vector<16x128xf32>
    %48 = tpu.matmul %0, %47, %cst_30 {dimension_numbers = #tpu.dot_dimension_numbers<[1], [0], [0], [1], [0, 0, 1, 1], [], []>} : vector<16x64xf32>, vector<64x128xf32>, vector<16x128xf32> -> vector<16x128xf32>
    %49 = arith.mulf %0, %1 : vector<16x64xf32>
    %c0_31 = arith.constant 0 : index
    %c0_32 = arith.constant 0 : index
    %50 = vector.load %arg10[%c0_31, %c0_32] : memref<64x128xf32, #tpu.memory_space<vmem>>, vector<64x128xf32>
    %cst_33 = arith.constant dense<0.000000e+00> : vector<16x128xf32>
    %51 = tpu.matmul %49, %50, %cst_33 {dimension_numbers = #tpu.dot_dimension_numbers<[1], [0], [0], [1], [0, 0, 1, 1], [], []>} : vector<16x64xf32>, vector<64x128xf32>, vector<16x128xf32> -> vector<16x128xf32>
    %52 = arith.addf %48, %51 : vector<16x128xf32>
    %c0_34 = arith.constant 0 : index
    %c0_35 = arith.constant 0 : index
    %53 = vector.load %arg11[%c0_34, %c0_35] : memref<1x128xf32, #tpu.memory_space<vmem>>, vector<1x128xf32>
    %54 = vector.broadcast %53 : vector<1x128xf32> to vector<16x128xf32>
    %55 = arith.addf %52, %54 : vector<16x128xf32>
    %cst_36 = arith.constant 5.000000e-01 : f32
    %56 = vector.broadcast %cst_36 : f32 to vector<16x128xf32>
    %57 = arith.mulf %56, %55 : vector<16x128xf32>
    %cst_37 = arith.constant 0.797884583 : f32
    %58 = vector.broadcast %cst_37 : f32 to vector<16x128xf32>
    %59 = arith.mulf %55, %58 : vector<16x128xf32>
    %cst_38 = arith.constant 4.471500e-02 : f32
    %60 = vector.broadcast %cst_38 : f32 to vector<16x128xf32>
    %61 = arith.mulf %60, %55 : vector<16x128xf32>
    %62 = arith.mulf %61, %55 : vector<16x128xf32>
    %cst_39 = arith.constant 1.000000e+00 : f32
    %63 = vector.broadcast %cst_39 : f32 to vector<16x128xf32>
    %64 = arith.addf %63, %62 : vector<16x128xf32>
    %65 = arith.mulf %59, %64 : vector<16x128xf32>
    %66 = math.tanh %65 : vector<16x128xf32>
    %cst_40 = arith.constant 1.000000e+00 : f32
    %67 = vector.broadcast %cst_40 : f32 to vector<16x128xf32>
    %68 = arith.addf %67, %66 : vector<16x128xf32>
    %69 = arith.mulf %57, %68 : vector<16x128xf32>
    %c0_41 = arith.constant 0 : index
    %c0_42 = arith.constant 0 : index
    %70 = vector.load %arg12[%c0_41, %c0_42] : memref<128x128xf32, #tpu.memory_space<vmem>>, vector<128x128xf32>
    %cst_43 = arith.constant dense<0.000000e+00> : vector<16x128xf32>
    %71 = tpu.matmul %23, %70, %cst_43 {dimension_numbers = #tpu.dot_dimension_numbers<[1], [0], [0], [1], [0, 0, 1, 1], [], []>} : vector<16x128xf32>, vector<128x128xf32>, vector<16x128xf32> -> vector<16x128xf32>
    %c0_44 = arith.constant 0 : index
    %c0_45 = arith.constant 0 : index
    %72 = vector.load %arg13[%c0_44, %c0_45] : memref<128x128xf32, #tpu.memory_space<vmem>>, vector<128x128xf32>
    %cst_46 = arith.constant dense<0.000000e+00> : vector<16x128xf32>
    %73 = tpu.matmul %46, %72, %cst_46 {dimension_numbers = #tpu.dot_dimension_numbers<[1], [0], [0], [1], [0, 0, 1, 1], [], []>} : vector<16x128xf32>, vector<128x128xf32>, vector<16x128xf32> -> vector<16x128xf32>
    %74 = arith.addf %71, %73 : vector<16x128xf32>
    %c0_47 = arith.constant 0 : index
    %c0_48 = arith.constant 0 : index
    %75 = vector.load %arg14[%c0_47, %c0_48] : memref<128x128xf32, #tpu.memory_space<vmem>>, vector<128x128xf32>
    %cst_49 = arith.constant dense<0.000000e+00> : vector<16x128xf32>
    %76 = tpu.matmul %69, %75, %cst_49 {dimension_numbers = #tpu.dot_dimension_numbers<[1], [0], [0], [1], [0, 0, 1, 1], [], []>} : vector<16x128xf32>, vector<128x128xf32>, vector<16x128xf32> -> vector<16x128xf32>
    %77 = arith.addf %74, %76 : vector<16x128xf32>
    %c0_50 = arith.constant 0 : index
    %c0_51 = arith.constant 0 : index
    %78 = vector.load %arg15[%c0_50, %c0_51] : memref<1x128xf32, #tpu.memory_space<vmem>>, vector<1x128xf32>
    %79 = vector.broadcast %78 : vector<1x128xf32> to vector<16x128xf32>
    %80 = arith.addf %77, %79 : vector<16x128xf32>
    %cst_52 = arith.constant 5.000000e-01 : f32
    %81 = vector.broadcast %cst_52 : f32 to vector<16x128xf32>
    %82 = arith.mulf %81, %80 : vector<16x128xf32>
    %cst_53 = arith.constant 0.797884583 : f32
    %83 = vector.broadcast %cst_53 : f32 to vector<16x128xf32>
    %84 = arith.mulf %80, %83 : vector<16x128xf32>
    %cst_54 = arith.constant 4.471500e-02 : f32
    %85 = vector.broadcast %cst_54 : f32 to vector<16x128xf32>
    %86 = arith.mulf %85, %80 : vector<16x128xf32>
    %87 = arith.mulf %86, %80 : vector<16x128xf32>
    %cst_55 = arith.constant 1.000000e+00 : f32
    %88 = vector.broadcast %cst_55 : f32 to vector<16x128xf32>
    %89 = arith.addf %88, %87 : vector<16x128xf32>
    %90 = arith.mulf %84, %89 : vector<16x128xf32>
    %91 = math.tanh %90 : vector<16x128xf32>
    %cst_56 = arith.constant 1.000000e+00 : f32
    %92 = vector.broadcast %cst_56 : f32 to vector<16x128xf32>
    %93 = arith.addf %92, %91 : vector<16x128xf32>
    %94 = arith.mulf %82, %93 : vector<16x128xf32>
    %c0_57 = arith.constant 0 : index
    %c0_58 = arith.constant 0 : index
    %95 = vector.load %arg16[%c0_57, %c0_58] : memref<16x128xf32, #tpu.memory_space<vmem>>, vector<16x128xf32>
    tpu.vector_store %arg16[%c0_57, %c0_58], %94 {strides = array<i32>} : memref<16x128xf32, #tpu.memory_space<vmem>>, vector<16x128xf32>,
    return
  }
  func.func @transform_0(%arg0: i32) -> (i32, i32) {
    %c0_i32 = arith.constant 0 : i32
    %c0_i32_0 = arith.constant 0 : i32
    return %arg0, %c0_i32 : i32, i32
  }
  func.func @transform_1(%arg0: i32) -> (i32, i32) {
    %c0_i32 = arith.constant 0 : i32
    %c0_i32_0 = arith.constant 0 : i32
    return %arg0, %c0_i32 : i32, i32
  }
  func.func @transform_2(%arg0: i32) -> (i32, i32) {
    %c0_i32 = arith.constant 0 : i32
    %c0_i32_0 = arith.constant 0 : i32
    %c0_i32_1 = arith.constant 0 : i32
    return %c0_i32, %c0_i32_0 : i32, i32
  }
  func.func @transform_3(%arg0: i32) -> (i32, i32) {
    %c0_i32 = arith.constant 0 : i32
    %c0_i32_0 = arith.constant 0 : i32
    %c0_i32_1 = arith.constant 0 : i32
    return %c0_i32, %c0_i32_0 : i32, i32
  }
  func.func @transform_4(%arg0: i32) -> (i32, i32) {
    %c0_i32 = arith.constant 0 : i32
    %c0_i32_0 = arith.constant 0 : i32
    %c0_i32_1 = arith.constant 0 : i32
    return %c0_i32, %c0_i32_0 : i32, i32
  }
  func.func @transform_5(%arg0: i32) -> (i32, i32) {
    %c0_i32 = arith.constant 0 : i32
    %c0_i32_0 = arith.constant 0 : i32
    %c0_i32_1 = arith.constant 0 : i32
    return %c0_i32, %c0_i32_0 : i32, i32
  }
  func.func @transform_6(%arg0: i32) -> (i32, i32) {
    %c0_i32 = arith.constant 0 : i32
    %c0_i32_0 = arith.constant 0 : i32
    %c0_i32_1 = arith.constant 0 : i32
    return %c0_i32, %c0_i32_0 : i32, i32
  }
  func.func @transform_7(%arg0: i32) -> (i32, i32) {
    %c0_i32 = arith.constant 0 : i32
    %c0_i32_0 = arith.constant 0 : i32
    %c0_i32_1 = arith.constant 0 : i32
    return %c0_i32, %c0_i32_0 : i32, i32
  }
  func.func @transform_8(%arg0: i32) -> (i32, i32) {
    %c0_i32 = arith.constant 0 : i32
    %c0_i32_0 = arith.constant 0 : i32
    %c0_i32_1 = arith.constant 0 : i32
    return %c0_i32, %c0_i32_0 : i32, i32
  }
  func.func @transform_9(%arg0: i32) -> (i32, i32) {
    %c0_i32 = arith.constant 0 : i32
    %c0_i32_0 = arith.constant 0 : i32
    %c0_i32_1 = arith.constant 0 : i32
    return %c0_i32, %c0_i32_0 : i32, i32
  }
  func.func @transform_10(%arg0: i32) -> (i32, i32) {
    %c0_i32 = arith.constant 0 : i32
    %c0_i32_0 = arith.constant 0 : i32
    %c0_i32_1 = arith.constant 0 : i32
    return %c0_i32, %c0_i32_0 : i32, i32
  }
  func.func @transform_11(%arg0: i32) -> (i32, i32) {
    %c0_i32 = arith.constant 0 : i32
    %c0_i32_0 = arith.constant 0 : i32
    %c0_i32_1 = arith.constant 0 : i32
    return %c0_i32, %c0_i32_0 : i32, i32
  }
  func.func @transform_12(%arg0: i32) -> (i32, i32) {
    %c0_i32 = arith.constant 0 : i32
    %c0_i32_0 = arith.constant 0 : i32
    %c0_i32_1 = arith.constant 0 : i32
    return %c0_i32, %c0_i32_0 : i32, i32
  }
  func.func @transform_13(%arg0: i32) -> (i32, i32) {
    %c0_i32 = arith.constant 0 : i32
    %c0_i32_0 = arith.constant 0 : i32
    %c0_i32_1 = arith.constant 0 : i32
    return %c0_i32, %c0_i32_0 : i32, i32
  }
  func.func @transform_14(%arg0: i32) -> (i32, i32) {
    %c0_i32 = arith.constant 0 : i32
    %c0_i32_0 = arith.constant 0 : i32
    %c0_i32_1 = arith.constant 0 : i32
    return %c0_i32, %c0_i32_0 : i32, i32
  }
  func.func @transform_15(%arg0: i32) -> (i32, i32) {
    %c0_i32 = arith.constant 0 : i32
    %c0_i32_0 = arith.constant 0 : i32
    return %arg0, %c0_i32 : i32, i32
  }
}

</mosaic_0001>

<llo_original>
// kernel: tpu_custom_call.1
$region0: #{tpu_custom_call.1}
  #allocation0 [shape = 'u32[]', space=smem, size = 0x4, offset = 0x4, fixed_abs, tag = 'smem constant byte address 0x4 - core index']
  #allocation1 [shape = 'u32[144,128]{1,0:T(1,128)}', space=vmem, size = 0x12000, scoped, tag = 'internal scratch']
  %s0 = inlined_call_operand.hbm [shape: f32[16,64], index: 0, kind: input, shape index: {}]
  %s1 = inlined_call_operand.hbm [shape: f32[16,64], index: 1, kind: input, shape index: {}]
  %s2 = inlined_call_operand.hbm [shape: f32[64,128], index: 2, kind: input, shape index: {}]
  %s3 = inlined_call_operand.hbm [shape: f32[64,128], index: 3, kind: input, shape index: {}]
  %s4 = inlined_call_operand.vmem [shape: f32[1,128], index: 4, kind: input, shape index: {}]
  %s5 = inlined_call_operand.hbm [shape: f32[64,128], index: 5, kind: input, shape index: {}]
  %s6 = inlined_call_operand.hbm [shape: f32[64,128], index: 6, kind: input, shape index: {}]
  %s7 = inlined_call_operand.vmem [shape: f32[1,128], index: 7, kind: input, shape index: {}]
  %s8 = inlined_call_operand.hbm [shape: f32[64,128], index: 8, kind: input, shape index: {}]
  %s9 = inlined_call_operand.hbm [shape: f32[64,128], index: 9, kind: input, shape index: {}]
  %s10 = inlined_call_operand.vmem [shape: f32[1,128], index: 10, kind: input, shape index: {}]
  %s11 = inlined_call_operand.hbm [shape: f32[128,128], index: 11, kind: input, shape index: {}]
  %s12 = inlined_call_operand.hbm [shape: f32[128,128], index: 12, kind: input, shape index: {}]
  %s13 = inlined_call_operand.hbm [shape: f32[128,128], index: 13, kind: input, shape index: {}]
  %s14 = inlined_call_operand.vmem [shape: f32[1,128], index: 14, kind: input, shape index: {}]
  %s15 = inlined_call_operand.hbm [shape: f32[16,128], index: 15, kind: output, shape index: {}]
  %s16 = sld [smem:[#allocation0]]
  $region114: #{tpu_custom_call.1} parent=0
    _
  %s18 = ssub.s32 1, %s16
  %s19 = scalar_select 0, %s18, %s16
  $region1: #{tpu_custom_call.1} parent=0
    #allocation2 [shape = 'u8[8192]{0}', space=vmem, size = 0x2000, scoped, tag = 'input window, operand 0, single buffered']
    #allocation3 [shape = 's32[1]{0}', space=sflag, size = 0x4, scoped, tag = 'scoped memory for tpu_custom_call.1']
    #allocation4 [shape = 's32[1]{0}', space=sflag, size = 0x4, scoped, tag = 'scoped memory for tpu_custom_call.1']
    #allocation5 [shape = 'u8[8192]{0}', space=vmem, size = 0x2000, scoped, tag = 'input window, operand 1, single buffered']
    #allocation6 [shape = 's32[1]{0}', space=sflag, size = 0x4, scoped, tag = 'scoped memory for tpu_custom_call.1']
    #allocation7 [shape = 'u8[32768]{0}', space=vmem, size = 0x8000, scoped, tag = 'input window, operand 2, single buffered']
    #allocation8 [shape = 'u8[32768]{0}', space=vmem, size = 0x8000, scoped, tag = 'input window, operand 3, single buffered']
    #allocation9 [shape = 's32[1]{0}', space=sflag, size = 0x4, scoped, tag = 'scoped memory for tpu_custom_call.1']
    #allocation10 [shape = 'u8[32768]{0}', space=vmem, size = 0x8000, scoped, tag = 'input window, operand 5, single buffered']
    #allocation11 [shape = 'u8[32768]{0}', space=vmem, size = 0x8000, scoped, tag = 'input window, operand 6, single buffered']
    #allocation12 [shape = 's32[1]{0}', space=sflag, size = 0x4, scoped, tag = 'scoped memory for tpu_custom_call.1']
    #allocation13 [shape = 'u8[32768]{0}', space=vmem, size = 0x8000, scoped, tag = 'input window, operand 8, single buffered']
    #allocation14 [shape = 'u8[32768]{0}', space=vmem, size = 0x8000, scoped, tag = 'input window, operand 9, single buffered']
    #allocation15 [shape = 's32[1]{0}', space=sflag, size = 0x4, scoped, tag = 'scoped memory for tpu_custom_call.1']
    #allocation16 [shape = 'u8[65536]{0}', space=vmem, size = 0x10000, scoped, tag = 'input window, operand 11, single buffered']
    #allocation17 [shape = 'u8[65536]{0}', space=vmem, size = 0x10000, scoped, tag = 'input window, operand 12, single buffered']
    #allocation18 [shape = 's32[1]{0}', space=sflag, size = 0x4, scoped, tag = 'scoped memory for tpu_custom_call.1']
    #allocation19 [shape = 'u8[65536]{0}', space=vmem, size = 0x10000, scoped, tag = 'input window, operand 13, single buffered']
    #allocation20 [shape = 'u8[8192]{0}', space=vmem, size = 0x2000, scoped, tag = 'output window, operand 0, single buffered']
    %20 = vsyncpa [#allocation3], 0
    %21 = vsyncpa [#allocation6], 0
    %22 = vsyncpa [#allocation9], 0
    %23 = vsyncpa [#allocation12], 0
    %24 = vsyncpa [#allocation15], 0
    %25 = vsyncpa [#allocation18], 0
    %26 = vsyncpa [#allocation4], 0
    // Predicated region
    $region2: #{tpu_custom_call.1} parent=1 // pred_check
      _
    $region3: #{tpu_custom_call.1} parent=1 // pred_check_branch
      %28 = sbr.rel (0) target = $region5
    $region4: #{tpu_custom_call.1} parent=1 // pred_region
      %s30 = ssub.s32 256, 256
      %31 = vsyncadd [#allocation3], %s30
      %s32 = sshll.u32 [#allocation2], 4
      %s33 = int_to_ptr.vmem [resolvable:$true] %s32
      %38 = dma.hbm_to_vmem [thread:$0]  %s0, 256, %s33, [#allocation3], 128, 128, 8
    $region5: #{tpu_custom_call.1} parent=1 // pred_fallthru
      _
    // Predicated region
    $region6: #{tpu_custom_call.1} parent=1 // pred_check
      _
    $region7: #{tpu_custom_call.1} parent=1 // pred_check_branch
      %40 = sbr.rel (0) target = $region9
    $region8: #{tpu_custom_call.1} parent=1 // pred_region
      %s42 = ssub.s32 256, 256
      %43 = vsyncadd [#allocation6], %s42
      %s44 = sshll.u32 [#allocation5], 4
      %s45 = int_to_ptr.vmem [resolvable:$true] %s44
      %50 = dma.hbm_to_vmem [thread:$0]  %s1, 256, %s45, [#allocation6], 128, 128, 8
    $region9: #{tpu_custom_call.1} parent=1 // pred_fallthru
      _
    // Predicated region
    $region10: #{tpu_custom_call.1} parent=1 // pred_check
      _
    $region11: #{tpu_custom_call.1} parent=1 // pred_check_branch
      %52 = sbr.rel (0) target = $region13
    $region12: #{tpu_custom_call.1} parent=1 // pred_region
      %s54 = ssub.s32 1024, 1024
      %55 = vsyncadd [#allocation6], %s54
      %s56 = sshll.u32 [#allocation7], 4
      %s57 = int_to_ptr.vmem [resolvable:$true] %s56
      %62 = dma.hbm_to_vmem [thread:$0]  %s2, 1024, %s57, [#allocation6], 128, 128, 8
    $region13: #{tpu_custom_call.1} parent=1 // pred_fallthru
      _
    // Predicated region
    $region14: #{tpu_custom_call.1} parent=1 // pred_check
      _
    $region15: #{tpu_custom_call.1} parent=1 // pred_check_branch
      %64 = sbr.rel (0) target = $region17
    $region16: #{tpu_custom_call.1} parent=1 // pred_region
      %s66 = ssub.s32 1024, 1024
      %67 = vsyncadd [#allocation9], %s66
      %s68 = sshll.u32 [#allocation8], 4
      %s69 = int_to_ptr.vmem [resolvable:$true] %s68
      %74 = dma.hbm_to_vmem [thread:$0]  %s3, 1024, %s69, [#allocation9], 128, 128, 8
    $region17: #{tpu_custom_call.1} parent=1 // pred_fallthru
      _
    // Predicated region
    $region18: #{tpu_custom_call.1} parent=1 // pred_check
      _
    $region19: #{tpu_custom_call.1} parent=1 // pred_check_branch
      %76 = sbr.rel (0) target = $region21
    $region20: #{tpu_custom_call.1} parent=1 // pred_region
      _
    $region21: #{tpu_custom_call.1} parent=1 // pred_fallthru
      _
    // Predicated region
    $region22: #{tpu_custom_call.1} parent=1 // pred_check
      _
    $region23: #{tpu_custom_call.1} parent=1 // pred_check_branch
      %78 = sbr.rel (0) target = $region25
    $region24: #{tpu_custom_call.1} parent=1 // pred_region
      %s80 = ssub.s32 1024, 1024
      %81 = vsyncadd [#allocation9], %s80
      %s82 = sshll.u32 [#allocation10], 4
      %s83 = int_to_ptr.vmem [resolvable:$true] %s82
      %88 = dma.hbm_to_vmem [thread:$0]  %s5, 1024, %s83, [#allocation9], 128, 128, 8
    $region25: #{tpu_custom_call.1} parent=1 // pred_fallthru
      _
    // Predicated region
    $region26: #{tpu_custom_call.1} parent=1 // pred_check
      _
    $region27: #{tpu_custom_call.1} parent=1 // pred_check_branch
      %90 = sbr.rel (0) target = $region29
    $region28: #{tpu_custom_call.1} parent=1 // pred_region
      %s92 = ssub.s32 1024, 1024
      %93 = vsyncadd [#allocation12], %s92
      %s94 = sshll.u32 [#allocation11], 4
      %s95 = int_to_ptr.vmem [resolvable:$true] %s94
      %100 = dma.hbm_to_vmem [thread:$0]  %s6, 1024, %s95, [#allocation12], 128, 128, 8
    $region29: #{tpu_custom_call.1} parent=1 // pred_fallthru
      _
    // Predicated region
    $region30: #{tpu_custom_call.1} parent=1 // pred_check
      _
    $region31: #{tpu_custom_call.1} parent=1 // pred_check_branch
      %102 = sbr.rel (0) target = $region33
    $region32: #{tpu_custom_call.1} parent=1 // pred_region
      _
    $region33: #{tpu_custom_call.1} parent=1 // pred_fallthru
      _
    // Predicated region
    $region34: #{tpu_custom_call.1} parent=1 // pred_check
      _
    $region35: #{tpu_custom_call.1} parent=1 // pred_check_branch
      %104 = sbr.rel (0) target = $region37
    $region36: #{tpu_custom_call.1} parent=1 // pred_region
      %s106 = ssub.s32 1024, 1024
      %107 = vsyncadd [#allocation12], %s106
      %s108 = sshll.u32 [#allocation13], 4
      %s109 = int_to_ptr.vmem [resolvable:$true] %s108
      %114 = dma.hbm_to_vmem [thread:$0]  %s8, 1024, %s109, [#allocation12], 128, 128, 8
    $region37: #{tpu_custom_call.1} parent=1 // pred_fallthru
      _
    // Predicated region
    $region38: #{tpu_custom_call.1} parent=1 // pred_check
      _
    $region39: #{tpu_custom_call.1} parent=1 // pred_check_branch
      %116 = sbr.rel (0) target = $region41
    $region40: #{tpu_custom_call.1} parent=1 // pred_region
      %s118 = ssub.s32 1024, 1024
      %119 = vsyncadd [#allocation15], %s118
      %s120 = sshll.u32 [#allocation14], 4
      %s121 = int_to_ptr.vmem [resolvable:$true] %s120
      %126 = dma.hbm_to_vmem [thread:$0]  %s9, 1024, %s121, [#allocation15], 128, 128, 8
    $region41: #{tpu_custom_call.1} parent=1 // pred_fallthru
      _
    // Predicated region
    $region42: #{tpu_custom_call.1} parent=1 // pred_check
      _
    $region43: #{tpu_custom_call.1} parent=1 // pred_check_branch
      %128 = sbr.rel (0) target = $region45
    $region44: #{tpu_custom_call.1} parent=1 // pred_region
      _
    $region45: #{tpu_custom_call.1} parent=1 // pred_fallthru
      _
    // Predicated region
    $region46: #{tpu_custom_call.1} parent=1 // pred_check
      _
    $region47: #{tpu_custom_call.1} parent=1 // pred_check_branch
      %130 = sbr.rel (0) target = $region49
    $region48: #{tpu_custom_call.1} parent=1 // pred_region
      %s132 = ssub.s32 2048, 2048
      %133 = vsyncadd [#allocation15], %s132
      %s134 = sshll.u32 [#allocation16], 4
      %s135 = int_to_ptr.vmem [resolvable:$true] %s134
      %140 = dma.hbm_to_vmem [thread:$0]  %s11, 2048, %s135, [#allocation15], 128, 128, 8
    $region49: #{tpu_custom_call.1} parent=1 // pred_fallthru
      _
    // Predicated region
    $region50: #{tpu_custom_call.1} parent=1 // pred_check
      _
    $region51: #{tpu_custom_call.1} parent=1 // pred_check_branch
      %142 = sbr.rel (0) target = $region53
    $region52: #{tpu_custom_call.1} parent=1 // pred_region
      %s144 = ssub.s32 2048, 2048
      %145 = vsyncadd [#allocation18], %s144
      %s146 = sshll.u32 [#allocation17], 4
      %s147 = int_to_ptr.vmem [resolvable:$true] %s146
      %152 = dma.hbm_to_vmem [thread:$0]  %s12, 2048, %s147, [#allocation18], 128, 128, 8
    $region53: #{tpu_custom_call.1} parent=1 // pred_fallthru
      _
    // Predicated region
    $region54: #{tpu_custom_call.1} parent=1 // pred_check
      _
    $region55: #{tpu_custom_call.1} parent=1 // pred_check_branch
      %154 = sbr.rel (0) target = $region57
    $region56: #{tpu_custom_call.1} parent=1 // pred_region
      %s156 = ssub.s32 2048, 2048
      %157 = vsyncadd [#allocation18], %s156
      %s158 = sshll.u32 [#allocation19], 4
      %s159 = int_to_ptr.vmem [resolvable:$true] %s158
      %164 = dma.hbm_to_vmem [thread:$0]  %s13, 2048, %s159, [#allocation18], 128, 128, 8
    $region57: #{tpu_custom_call.1} parent=1 // pred_fallthru
      _
    // Predicated region
    $region58: #{tpu_custom_call.1} parent=1 // pred_check
      _
    $region59: #{tpu_custom_call.1} parent=1 // pred_check_branch
      %166 = sbr.rel (0) target = $region61
    $region60: #{tpu_custom_call.1} parent=1 // pred_region
      _
    $region61: #{tpu_custom_call.1} parent=1 // pred_fallthru
      _
    // Predicated region
    $region62: #{tpu_custom_call.1} parent=1 // pred_check
      _
    $region63: #{tpu_custom_call.1} parent=1 // pred_check_branch
      %168 = sbr.rel (0) target = $region65
    $region64: #{tpu_custom_call.1} parent=1 // pred_region
      %169 = dma.done [#allocation3], 256
    $region65: #{tpu_custom_call.1} parent=1 // pred_fallthru
      _
    // Predicated region
    $region66: #{tpu_custom_call.1} parent=1 // pred_check
      _
    $region67: #{tpu_custom_call.1} parent=1 // pred_check_branch
      %171 = sbr.rel (0) target = $region69
    $region68: #{tpu_custom_call.1} parent=1 // pred_region
      %172 = dma.done [#allocation6], 256
    $region69: #{tpu_custom_call.1} parent=1 // pred_fallthru
      _
    // Predicated region
    $region70: #{tpu_custom_call.1} parent=1 // pred_check
      _
    $region71: #{tpu_custom_call.1} parent=1 // pred_check_branch
      %174 = sbr.rel (0) target = $region73
    $region72: #{tpu_custom_call.1} parent=1 // pred_region
      %175 = dma.done [#allocation6], 1024
    $region73: #{tpu_custom_call.1} parent=1 // pred_fallthru
      _
    // Predicated region
    $region74: #{tpu_custom_call.1} parent=1 // pred_check
      _
    $region75: #{tpu_custom_call.1} parent=1 // pred_check_branch
      %177 = sbr.rel (0) target = $region77
    $region76: #{tpu_custom_call.1} parent=1 // pred_region
      %178 = dma.done [#allocation9], 1024
    $region77: #{tpu_custom_call.1} parent=1 // pred_fallthru
      _
    // Predicated region
    $region78: #{tpu_custom_call.1} parent=1 // pred_check
      _
    $region79: #{tpu_custom_call.1} parent=1 // pred_check_branch
      %180 = sbr.rel (0) target = $region81
    $region80: #{tpu_custom_call.1} parent=1 // pred_region
      %181 = dma.done [#allocation9], 1024
    $region81: #{tpu_custom_call.1} parent=1 // pred_fallthru
      _
    // Predicated region
    $region82: #{tpu_custom_call.1} parent=1 // pred_check
      _
    $region83: #{tpu_custom_call.1} parent=1 // pred_check_branch
      %183 = sbr.rel (0) target = $region85
    $region84: #{tpu_custom_call.1} parent=1 // pred_region
      %184 = dma.done [#allocation12], 1024
    $region85: #{tpu_custom_call.1} parent=1 // pred_fallthru
      _
    // Predicated region
    $region86: #{tpu_custom_call.1} parent=1 // pred_check
      _
    $region87: #{tpu_custom_call.1} parent=1 // pred_check_branch
      %186 = sbr.rel (0) target = $region89
    $region88: #{tpu_custom_call.1} parent=1 // pred_region
      %187 = dma.done [#allocation12], 1024
    $region89: #{tpu_custom_call.1} parent=1 // pred_fallthru
      _
    // Predicated region
    $region90: #{tpu_custom_call.1} parent=1 // pred_check
      _
    $region91: #{tpu_custom_call.1} parent=1 // pred_check_branch
      %189 = sbr.rel (0) target = $region93
    $region92: #{tpu_custom_call.1} parent=1 // pred_region
      %190 = dma.done [#allocation15], 1024
    $region93: #{tpu_custom_call.1} parent=1 // pred_fallthru
      _
    // Predicated region
    $region94: #{tpu_custom_call.1} parent=1 // pred_check
      _
    $region95: #{tpu_custom_call.1} parent=1 // pred_check_branch
      %192 = sbr.rel (0) target = $region97
    $region96: #{tpu_custom_call.1} parent=1 // pred_region
      %193 = dma.done [#allocation15], 2048
    $region97: #{tpu_custom_call.1} parent=1 // pred_fallthru
      _
    // Predicated region
    $region98: #{tpu_custom_call.1} parent=1 // pred_check
      _
    $region99: #{tpu_custom_call.1} parent=1 // pred_check_branch
      %195 = sbr.rel (0) target = $region101
    $region100: #{tpu_custom_call.1} parent=1 // pred_region
      %196 = dma.done [#allocation18], 2048
    $region101: #{tpu_custom_call.1} parent=1 // pred_fallthru
      _
    // Predicated region
    $region102: #{tpu_custom_call.1} parent=1 // pred_check
      _
    $region103: #{tpu_custom_call.1} parent=1 // pred_check_branch
      %198 = sbr.rel (0) target = $region105
    $region104: #{tpu_custom_call.1} parent=1 // pred_region
      %199 = dma.done [#allocation18], 2048
    $region105: #{tpu_custom_call.1} parent=1 // pred_fallthru
      _
    %v200 = vld [vmem:[#allocation2] sm:$0xff]
    %v201 = vld [vmem:[#allocation2 + $0x8] sm:$0xff]
    %v202 = vld [vmem:[#allocation5] sm:$0xff]
    %v203 = vld [vmem:[#allocation5 + $0x8] sm:$0xff]
    %v204 = vld [vmem:[#allocation7] sm:$0xff]
    %v205 = vld [vmem:[#allocation7 + $0x8] sm:$0xff]
    %v206 = vld [vmem:[#allocation7 + $0x10] sm:$0xff]
    %v207 = vld [vmem:[#allocation7 + $0x18] sm:$0xff]
    %v208 = vld [vmem:[#allocation7 + $0x20] sm:$0xff]
    %v209 = vld [vmem:[#allocation7 + $0x28] sm:$0xff]
    %v210 = vld [vmem:[#allocation7 + $0x30] sm:$0xff]
    %v211 = vld [vmem:[#allocation7 + $0x38] sm:$0xff]
    %v212 = vld [vmem:[#allocation8] sm:$0xff]
    %v213 = vld [vmem:[#allocation8 + $0x8] sm:$0xff]
    %v214 = vld [vmem:[#allocation8 + $0x10] sm:$0xff]
    %v215 = vld [vmem:[#allocation8 + $0x18] sm:$0xff]
    %v216 = vld [vmem:[#allocation8 + $0x20] sm:$0xff]
    %v217 = vld [vmem:[#allocation8 + $0x28] sm:$0xff]
    %v218 = vld [vmem:[#allocation8 + $0x30] sm:$0xff]
    %v219 = vld [vmem:[#allocation8 + $0x38] sm:$0xff]
    %vm220 = vcmask 523264
    %v222 = vsel %vm220, %v202, 0
    %v225 = vsel %vm220, %v203, 0
    %227 = vmatprep.subr.mxu0 0.0
    %228 = vmatpush1.msra.mxu0 %v212
    %229 = vmatprep.subr.mxu0 0.0
    %230 = vmatpush1.msra.mxu0 %v213
    %231 = vmatprep.subr.mxu0 0.0
    %232 = vmatpush1.msra.mxu0 %v214
    %233 = vmatprep.subr.mxu0 0.0
    %234 = vmatpush1.msra.mxu0 %v215
    %235 = vmatprep.subr.mxu0 0.0
    %236 = vmatpush1.msra.mxu0 %v216
    %237 = vmatprep.subr.mxu0 0.0
    %238 = vmatpush1.msra.mxu0 %v217
    %239 = vmatprep.subr.mxu0 0.0
    %240 = vmatpush1.msra.mxu0 %v218
    %241 = vmatprep.subr.mxu0 0.0
    %242 = vmatpush1.msra.mxu0 %v219
    %243 = vmatprep.subr.mxu0 0.0
    %244 = vmatpush1.msra.mxu0 0.0
    %245 = vmatprep.subr.mxu0 0.0
    %246 = vmatpush1.msra.mxu0 0.0
    %247 = vmatprep.subr.mxu0 0.0
    %248 = vmatpush1.msra.mxu0 0.0
    %249 = vmatprep.subr.mxu0 0.0
    %250 = vmatpush1.msra.mxu0 0.0
    %251 = vmatprep.subr.mxu0 0.0
    %252 = vmatpush1.msra.mxu0 0.0
    %253 = vmatprep.subr.mxu0 0.0
    %254 = vmatpush1.msra.mxu0 0.0
    %255 = vmatprep.subr.mxu0 0.0
    %256 = vmatpush1.msra.mxu0 0.0
    %257 = vmatprep.subr.mxu0 0.0
    %258 = vmatpush1.msra.mxu0 0.0
    %259 = vmatprep.subr.mxu0 0.0
    %260 = vmatpush1.msra.mxu0 0.0
    %261 = vmatprep.subr.mxu0 0.0
    %262 = vmatpush1.msra.mxu0 0.0
    %263 = vmatprep.subr.mxu0 0.0
    %264 = vmatpush1.msra.mxu0 0.0
    %265 = vmatprep.subr.mxu0 0.0
    %266 = vmatpush1.msra.mxu0 0.0
    %267 = vmatprep.subr.mxu0 0.0
    %268 = vmatpush1.msra.mxu0 0.0
    %269 = vmatprep.subr.mxu0 0.0
    %270 = vmatpush1.msra.mxu0 0.0
    %271 = vmatprep.subr.mxu0 0.0
    %272 = vmatpush1.msra.mxu0 0.0
    %273 = vmatprep.subr.mxu0 0.0
    %274 = vmatpush1.msra.mxu0 0.0
    %275 = vmatprep.subr.mxu0 0.0
    %276 = vmatpush1.msra.mxu0 0.0
    %277 = vmatprep.subr.mxu0 0.0
    %278 = vmatpush1.msra.mxu0 0.0
    %279 = vmatprep.subr.mxu0 0.0
    %280 = vmatpush1.msra.mxu0 0.0
    %281 = vmatprep.subr.mxu0 0.0
    %282 = vmatpush1.msra.mxu0 0.0
    %283 = vmatprep.subr.mxu0 0.0
    %284 = vmatpush1.msra.mxu0 0.0
    %285 = vmatprep.subr.mxu0 0.0
    %286 = vmatpush1.msra.mxu0 0.0
    %287 = vmatprep.subr.mxu0 0.0
    %288 = vmatpush1.msra.mxu0 0.0
    %289 = vmatprep.subr.mxu0 0.0
    %290 = vmatpush1.msra.mxu0 0.0
    %291 = vmatprep.mubr.f32.mxu0 0.0
    %292 = vmatmul.mubr.f32.gmra.mrb[0].mxu0 %v222
    %v293 = vpop.f32.mrb[0].mxu0
    %v294 = vadd.f32 0.0, %v293
    %v295 = vpop.f32.mrb[0].mxu0
    %296 = vmatprep.mubr.f32.mxu0 0.0
    %297 = vmatmul.mubr.f32.gmra.mrb[0].mxu0 %v225
    %v298 = vpop.f32.mrb[0].mxu0
    %v299 = vadd.f32 0.0, %v298
    %v300 = vpop.f32.mrb[0].mxu0
    %301 = vdwg.mxu0
    %v303 = vsel %vm220, %v200, 0
    %v306 = vsel %vm220, %v201, 0
    %308 = vmatprep.subr.mxu0 0.0
    %309 = vmatpush1.msra.mxu0 %v204
    %310 = vmatprep.subr.mxu0 0.0
    %311 = vmatpush1.msra.mxu0 %v205
    %312 = vmatprep.subr.mxu0 0.0
    %313 = vmatpush1.msra.mxu0 %v206
    %314 = vmatprep.subr.mxu0 0.0
    %315 = vmatpush1.msra.mxu0 %v207
    %316 = vmatprep.subr.mxu0 0.0
    %317 = vmatpush1.msra.mxu0 %v208
    %318 = vmatprep.subr.mxu0 0.0
    %319 = vmatpush1.msra.mxu0 %v209
    %320 = vmatprep.subr.mxu0 0.0
    %321 = vmatpush1.msra.mxu0 %v210
    %322 = vmatprep.subr.mxu0 0.0
    %323 = vmatpush1.msra.mxu0 %v211
    %324 = vmatprep.subr.mxu0 0.0
    %325 = vmatpush1.msra.mxu0 0.0
    %326 = vmatprep.subr.mxu0 0.0
    %327 = vmatpush1.msra.mxu0 0.0
    %328 = vmatprep.subr.mxu0 0.0
    %329 = vmatpush1.msra.mxu0 0.0
    %330 = vmatprep.subr.mxu0 0.0
    %331 = vmatpush1.msra.mxu0 0.0
    %332 = vmatprep.subr.mxu0 0.0
    %333 = vmatpush1.msra.mxu0 0.0
    %334 = vmatprep.subr.mxu0 0.0
    %335 = vmatpush1.msra.mxu0 0.0
    %336 = vmatprep.subr.mxu0 0.0
    %337 = vmatpush1.msra.mxu0 0.0
    %338 = vmatprep.subr.mxu0 0.0
    %339 = vmatpush1.msra.mxu0 0.0
    %340 = vmatprep.subr.mxu0 0.0
    %341 = vmatpush1.msra.mxu0 0.0
    %342 = vmatprep.subr.mxu0 0.0
    %343 = vmatpush1.msra.mxu0 0.0
    %344 = vmatprep.subr.mxu0 0.0
    %345 = vmatpush1.msra.mxu0 0.0
    %346 = vmatprep.subr.mxu0 0.0
    %347 = vmatpush1.msra.mxu0 0.0
    %348 = vmatprep.subr.mxu0 0.0
    %349 = vmatpush1.msra.mxu0 0.0
    %350 = vmatprep.subr.mxu0 0.0
    %351 = vmatpush1.msra.mxu0 0.0
    %352 = vmatprep.subr.mxu0 0.0
    %353 = vmatpush1.msra.mxu0 0.0
    %354 = vmatprep.subr.mxu0 0.0
    %355 = vmatpush1.msra.mxu0 0.0
    %356 = vmatprep.subr.mxu0 0.0
    %357 = vmatpush1.msra.mxu0 0.0
    %358 = vmatprep.subr.mxu0 0.0
    %359 = vmatpush1.msra.mxu0 0.0
    %360 = vmatprep.subr.mxu0 0.0
    %361 = vmatpush1.msra.mxu0 0.0
    %362 = vmatprep.subr.mxu0 0.0
    %363 = vmatpush1.msra.mxu0 0.0
    %364 = vmatprep.subr.mxu0 0.0
    %365 = vmatpush1.msra.mxu0 0.0
    %366 = vmatprep.subr.mxu0 0.0
    %367 = vmatpush1.msra.mxu0 0.0
    %368 = vmatprep.subr.mxu0 0.0
    %369 = vmatpush1.msra.mxu0 0.0
    %370 = vmatprep.subr.mxu0 0.0
    %371 = vmatpush1.msra.mxu0 0.0
    %372 = vmatprep.mubr.f32.mxu0 0.0
    %373 = vmatmul.mubr.f32.gmra.mrb[0].mxu0 %v303
    %v374 = vpop.f32.mrb[0].mxu0
    %v375 = vadd.f32 %v294, %v374
    %v376 = vpop.f32.mrb[0].mxu0
    %377 = vmatprep.mubr.f32.mxu0 0.0
    %378 = vmatmul.mubr.f32.gmra.mrb[0].mxu0 %v306
    %v379 = vpop.f32.mrb[0].mxu0
    %v380 = vadd.f32 %v299, %v379
    %v381 = vpop.f32.mrb[0].mxu0
    %382 = vdwg.mxu0
    %v383 = vld [vmem:[%s4] sm:$0x1]
    %v385 = vlaneseq
    %v386 = vshrl.u32 %v385, 7
    %v387 = vsub.s32 0, %v386
    %v388 = vrot.slane %v383, %v387
    %v390 = vadd.f32 %v375, %v388
    %v391 = vadd.f32 %v380, %v388
    %v392 = vmul.f32 %v390, 0.5
    %v393 = vmul.f32 %v391, 0.5
    %v394 = vmul.f32 %v390, 0.7978846
    %v395 = vmul.f32 %v391, 0.7978846
    %v396 = vmul.f32 %v390, 0.044715
    %v397 = vmul.f32 %v391, 0.044715
    %v398 = vmul.f32 %v396, %v390
    %v399 = vmul.f32 %v397, %v391
    %v400 = vadd.f32 %v398, 1.0
    %v401 = vadd.f32 %v399, 1.0
    %v402 = vmul.f32 %v394, %v400
    %v403 = vmul.f32 %v395, %v401
    %v404 = vtanh.pop %v402
    %v405 = vtanh.pop %v403
    %v406 = vadd.f32 %v404, 1.0
    %v407 = vadd.f32 %v405, 1.0
    %v408 = vmul.f32 %v392, %v406
    %v409 = vmul.f32 %v393, %v407
    %v410 = vld [vmem:[#allocation10] sm:$0xff]
    %v411 = vld [vmem:[#allocation10 + $0x8] sm:$0xff]
    %v412 = vld [vmem:[#allocation10 + $0x10] sm:$0xff]
    %v413 = vld [vmem:[#allocation10 + $0x18] sm:$0xff]
    %v414 = vld [vmem:[#allocation10 + $0x20] sm:$0xff]
    %v415 = vld [vmem:[#allocation10 + $0x28] sm:$0xff]
    %v416 = vld [vmem:[#allocation10 + $0x30] sm:$0xff]
    %v417 = vld [vmem:[#allocation10 + $0x38] sm:$0xff]
    %v418 = vsub.f32 %v200, %v202
    %v419 = vsub.f32 %v201, %v203
    %v420 = vld [vmem:[#allocation11] sm:$0xff]
    %v421 = vld [vmem:[#allocation11 + $0x8] sm:$0xff]
    %v422 = vld [vmem:[#allocation11 + $0x10] sm:$0xff]
    %v423 = vld [vmem:[#allocation11 + $0x18] sm:$0xff]
    %v424 = vld [vmem:[#allocation11 + $0x20] sm:$0xff]
    %v425 = vld [vmem:[#allocation11 + $0x28] sm:$0xff]
    %v426 = vld [vmem:[#allocation11 + $0x30] sm:$0xff]
    %v427 = vld [vmem:[#allocation11 + $0x38] sm:$0xff]
    %v429 = vsel %vm220, %v418, 0
    %v432 = vsel %vm220, %v419, 0
    %434 = vmatprep.subr.mxu0 0.0
    %435 = vmatpush1.msra.mxu0 %v420
    %436 = vmatprep.subr.mxu0 0.0
    %437 = vmatpush1.msra.mxu0 %v421
    %438 = vmatprep.subr.mxu0 0.0
    %439 = vmatpush1.msra.mxu0 %v422
    %440 = vmatprep.subr.mxu0 0.0
    %441 = vmatpush1.msra.mxu0 %v423
    %442 = vmatprep.subr.mxu0 0.0
    %443 = vmatpush1.msra.mxu0 %v424
    %444 = vmatprep.subr.mxu0 0.0
    %445 = vmatpush1.msra.mxu0 %v425
    %446 = vmatprep.subr.mxu0 0.0
    %447 = vmatpush1.msra.mxu0 %v426
    %448 = vmatprep.subr.mxu0 0.0
    %449 = vmatpush1.msra.mxu0 %v427
    %450 = vmatprep.subr.mxu0 0.0
    %451 = vmatpush1.msra.mxu0 0.0
    %452 = vmatprep.subr.mxu0 0.0
    %453 = vmatpush1.msra.mxu0 0.0
    %454 = vmatprep.subr.mxu0 0.0
    %455 = vmatpush1.msra.mxu0 0.0
    %456 = vmatprep.subr.mxu0 0.0
    %457 = vmatpush1.msra.mxu0 0.0
    %458 = vmatprep.subr.mxu0 0.0
    %459 = vmatpush1.msra.mxu0 0.0
    %460 = vmatprep.subr.mxu0 0.0
    %461 = vmatpush1.msra.mxu0 0.0
    %462 = vmatprep.subr.mxu0 0.0
    %463 = vmatpush1.msra.mxu0 0.0
    %464 = vmatprep.subr.mxu0 0.0
    %465 = vmatpush1.msra.mxu0 0.0
    %466 = vmatprep.subr.mxu0 0.0
    %467 = vmatpush1.msra.mxu0 0.0
    %468 = vmatprep.subr.mxu0 0.0
    %469 = vmatpush1.msra.mxu0 0.0
    %470 = vmatprep.subr.mxu0 0.0
    %471 = vmatpush1.msra.mxu0 0.0
    %472 = vmatprep.subr.mxu0 0.0
    %473 = vmatpush1.msra.mxu0 0.0
    %474 = vmatprep.subr.mxu0 0.0
    %475 = vmatpush1.msra.mxu0 0.0
    %476 = vmatprep.subr.mxu0 0.0
    %477 = vmatpush1.msra.mxu0 0.0
    %478 = vmatprep.subr.mxu0 0.0
    %479 = vmatpush1.msra.mxu0 0.0
    %480 = vmatprep.subr.mxu0 0.0
    %481 = vmatpush1.msra.mxu0 0.0
    %482 = vmatprep.subr.mxu0 0.0
    %483 = vmatpush1.msra.mxu0 0.0
    %484 = vmatprep.subr.mxu0 0.0
    %485 = vmatpush1.msra.mxu0 0.0
    %486 = vmatprep.subr.mxu0 0.0
    %487 = vmatpush1.msra.mxu0 0.0
    %488 = vmatprep.subr.mxu0 0.0
    %489 = vmatpush1.msra.mxu0 0.0
    %490 = vmatprep.subr.mxu0 0.0
    %491 = vmatpush1.msra.mxu0 0.0
    %492 = vmatprep.subr.mxu0 0.0
    %493 = vmatpush1.msra.mxu0 0.0
    %494 = vmatprep.subr.mxu0 0.0
    %495 = vmatpush1.msra.mxu0 0.0
    %496 = vmatprep.subr.mxu0 0.0
    %497 = vmatpush1.msra.mxu0 0.0
    %498 = vmatprep.mubr.f32.mxu0 0.0
    %499 = vmatmul.mubr.f32.gmra.mrb[0].mxu0 %v429
    %v500 = vpop.f32.mrb[0].mxu0
    %v501 = vadd.f32 0.0, %v500
    %v502 = vpop.f32.mrb[0].mxu0
    %503 = vmatprep.mubr.f32.mxu0 0.0
    %504 = vmatmul.mubr.f32.gmra.mrb[0].mxu0 %v432
    %v505 = vpop.f32.mrb[0].mxu0
    %v506 = vadd.f32 0.0, %v505
    %v507 = vpop.f32.mrb[0].mxu0
    %508 = vdwg.mxu0
    %509 = vmatprep.subr.mxu0 0.0
    %510 = vmatpush1.msra.mxu0 %v410
    %511 = vmatprep.subr.mxu0 0.0
    %512 = vmatpush1.msra.mxu0 %v411
    %513 = vmatprep.subr.mxu0 0.0
    %514 = vmatpush1.msra.mxu0 %v412
    %515 = vmatprep.subr.mxu0 0.0
    %516 = vmatpush1.msra.mxu0 %v413
    %517 = vmatprep.subr.mxu0 0.0
    %518 = vmatpush1.msra.mxu0 %v414
    %519 = vmatprep.subr.mxu0 0.0
    %520 = vmatpush1.msra.mxu0 %v415
    %521 = vmatprep.subr.mxu0 0.0
    %522 = vmatpush1.msra.mxu0 %v416
    %523 = vmatprep.subr.mxu0 0.0
    %524 = vmatpush1.msra.mxu0 %v417
    %525 = vmatprep.subr.mxu0 0.0
    %526 = vmatpush1.msra.mxu0 0.0
    %527 = vmatprep.subr.mxu0 0.0
    %528 = vmatpush1.msra.mxu0 0.0
    %529 = vmatprep.subr.mxu0 0.0
    %530 = vmatpush1.msra.mxu0 0.0
    %531 = vmatprep.subr.mxu0 0.0
    %532 = vmatpush1.msra.mxu0 0.0
    %533 = vmatprep.subr.mxu0 0.0
    %534 = vmatpush1.msra.mxu0 0.0
    %535 = vmatprep.subr.mxu0 0.0
    %536 = vmatpush1.msra.mxu0 0.0
    %537 = vmatprep.subr.mxu0 0.0
    %538 = vmatpush1.msra.mxu0 0.0
    %539 = vmatprep.subr.mxu0 0.0
    %540 = vmatpush1.msra.mxu0 0.0
    %541 = vmatprep.subr.mxu0 0.0
    %542 = vmatpush1.msra.mxu0 0.0
    %543 = vmatprep.subr.mxu0 0.0
    %544 = vmatpush1.msra.mxu0 0.0
    %545 = vmatprep.subr.mxu0 0.0
    %546 = vmatpush1.msra.mxu0 0.0
    %547 = vmatprep.subr.mxu0 0.0
    %548 = vmatpush1.msra.mxu0 0.0
    %549 = vmatprep.subr.mxu0 0.0
    %550 = vmatpush1.msra.mxu0 0.0
    %551 = vmatprep.subr.mxu0 0.0
    %552 = vmatpush1.msra.mxu0 0.0
    %553 = vmatprep.subr.mxu0 0.0
    %554 = vmatpush1.msra.mxu0 0.0
    %555 = vmatprep.subr.mxu0 0.0
    %556 = vmatpush1.msra.mxu0 0.0
    %557 = vmatprep.subr.mxu0 0.0
    %558 = vmatpush1.msra.mxu0 0.0
    %559 = vmatprep.subr.mxu0 0.0
    %560 = vmatpush1.msra.mxu0 0.0
    %561 = vmatprep.subr.mxu0 0.0
    %562 = vmatpush1.msra.mxu0 0.0
    %563 = vmatprep.subr.mxu0 0.0
    %564 = vmatpush1.msra.mxu0 0.0
    %565 = vmatprep.subr.mxu0 0.0
    %566 = vmatpush1.msra.mxu0 0.0
    %567 = vmatprep.subr.mxu0 0.0
    %568 = vmatpush1.msra.mxu0 0.0
    %569 = vmatprep.subr.mxu0 0.0
    %570 = vmatpush1.msra.mxu0 0.0
    %571 = vmatprep.subr.mxu0 0.0
    %572 = vmatpush1.msra.mxu0 0.0
    %573 = vmatprep.mubr.f32.mxu0 0.0
    %574 = vmatmul.mubr.f32.gmra.mrb[0].mxu0 %v303
    %v575 = vpop.f32.mrb[0].mxu0
    %v576 = vadd.f32 %v501, %v575
    %v577 = vpop.f32.mrb[0].mxu0
    %578 = vmatprep.mubr.f32.mxu0 0.0
    %579 = vmatmul.mubr.f32.gmra.mrb[0].mxu0 %v306
    %v580 = vpop.f32.mrb[0].mxu0
    %v581 = vadd.f32 %v506, %v580
    %v582 = vpop.f32.mrb[0].mxu0
    %583 = vdwg.mxu0
    %v584 = vld [vmem:[%s7] sm:$0x1]
    %v586 = vlaneseq
    %v587 = vshrl.u32 %v586, 7
    %v588 = vsub.s32 0, %v587
    %v589 = vrot.slane %v584, %v588
    %v591 = vadd.f32 %v576, %v589
    %v592 = vadd.f32 %v581, %v589
    %v593 = vmul.f32 %v591, 0.5
    %v594 = vmul.f32 %v592, 0.5
    %v595 = vmul.f32 %v591, 0.7978846
    %v596 = vmul.f32 %v592, 0.7978846
    %v597 = vmul.f32 %v591, 0.044715
    %v598 = vmul.f32 %v592, 0.044715
    %v599 = vmul.f32 %v597, %v591
    %v600 = vmul.f32 %v598, %v592
    %v601 = vadd.f32 %v599, 1.0
    %v602 = vadd.f32 %v600, 1.0
    %v603 = vmul.f32 %v595, %v601
    %v604 = vmul.f32 %v596, %v602
    %v605 = vtanh.pop %v603
    %v606 = vtanh.pop %v604
    %v607 = vadd.f32 %v605, 1.0
    %v608 = vadd.f32 %v606, 1.0
    %v609 = vmul.f32 %v593, %v607
    %v610 = vmul.f32 %v594, %v608
    %v611 = vld [vmem:[#allocation13] sm:$0xff]
    %v612 = vld [vmem:[#allocation13 + $0x8] sm:$0xff]
    %v613 = vld [vmem:[#allocation13 + $0x10] sm:$0xff]
    %v614 = vld [vmem:[#allocation13 + $0x18] sm:$0xff]
    %v615 = vld [vmem:[#allocation13 + $0x20] sm:$0xff]
    %v616 = vld [vmem:[#allocation13 + $0x28] sm:$0xff]
    %v617 = vld [vmem:[#allocation13 + $0x30] sm:$0xff]
    %v618 = vld [vmem:[#allocation13 + $0x38] sm:$0xff]
    %v619 = vmul.f32 %v200, %v202
    %v620 = vmul.f32 %v201, %v203
    %v621 = vld [vmem:[#allocation14] sm:$0xff]
    %v622 = vld [vmem:[#allocation14 + $0x8] sm:$0xff]
    %v623 = vld [vmem:[#allocation14 + $0x10] sm:$0xff]
    %v624 = vld [vmem:[#allocation14 + $0x18] sm:$0xff]
    %v625 = vld [vmem:[#allocation14 + $0x20] sm:$0xff]
    %v626 = vld [vmem:[#allocation14 + $0x28] sm:$0xff]
    %v627 = vld [vmem:[#allocation14 + $0x30] sm:$0xff]
    %v628 = vld [vmem:[#allocation14 + $0x38] sm:$0xff]
    %v630 = vsel %vm220, %v619, 0
    %v633 = vsel %vm220, %v620, 0
    %635 = vmatprep.subr.mxu0 0.0
    %636 = vmatpush1.msra.mxu0 %v621
    %637 = vmatprep.subr.mxu0 0.0
    %638 = vmatpush1.msra.mxu0 %v622
    %639 = vmatprep.subr.mxu0 0.0
    %640 = vmatpush1.msra.mxu0 %v623
    %641 = vmatprep.subr.mxu0 0.0
    %642 = vmatpush1.msra.mxu0 %v624
    %643 = vmatprep.subr.mxu0 0.0
    %644 = vmatpush1.msra.mxu0 %v625
    %645 = vmatprep.subr.mxu0 0.0
    %646 = vmatpush1.msra.mxu0 %v626
    %647 = vmatprep.subr.mxu0 0.0
    %648 = vmatpush1.msra.mxu0 %v627
    %649 = vmatprep.subr.mxu0 0.0
    %650 = vmatpush1.msra.mxu0 %v628
    %651 = vmatprep.subr.mxu0 0.0
    %652 = vmatpush1.msra.mxu0 0.0
    %653 = vmatprep.subr.mxu0 0.0
    %654 = vmatpush1.msra.mxu0 0.0
    %655 = vmatprep.subr.mxu0 0.0
    %656 = vmatpush1.msra.mxu0 0.0
    %657 = vmatprep.subr.mxu0 0.0
    %658 = vmatpush1.msra.mxu0 0.0
    %659 = vmatprep.subr.mxu0 0.0
    %660 = vmatpush1.msra.mxu0 0.0
    %661 = vmatprep.subr.mxu0 0.0
    %662 = vmatpush1.msra.mxu0 0.0
    %663 = vmatprep.subr.mxu0 0.0
    %664 = vmatpush1.msra.mxu0 0.0
    %665 = vmatprep.subr.mxu0 0.0
    %666 = vmatpush1.msra.mxu0 0.0
    %667 = vmatprep.subr.mxu0 0.0
    %668 = vmatpush1.msra.mxu0 0.0
    %669 = vmatprep.subr.mxu0 0.0
    %670 = vmatpush1.msra.mxu0 0.0
    %671 = vmatprep.subr.mxu0 0.0
    %672 = vmatpush1.msra.mxu0 0.0
    %673 = vmatprep.subr.mxu0 0.0
    %674 = vmatpush1.msra.mxu0 0.0
    %675 = vmatprep.subr.mxu0 0.0
    %676 = vmatpush1.msra.mxu0 0.0
    %677 = vmatprep.subr.mxu0 0.0
    %678 = vmatpush1.msra.mxu0 0.0
    %679 = vmatprep.subr.mxu0 0.0
    %680 = vmatpush1.msra.mxu0 0.0
    %681 = vmatprep.subr.mxu0 0.0
    %682 = vmatpush1.msra.mxu0 0.0
    %683 = vmatprep.subr.mxu0 0.0
    %684 = vmatpush1.msra.mxu0 0.0
    %685 = vmatprep.subr.mxu0 0.0
    %686 = vmatpush1.msra.mxu0 0.0
    %687 = vmatprep.subr.mxu0 0.0
    %688 = vmatpush1.msra.mxu0 0.0
    %689 = vmatprep.subr.mxu0 0.0
    %690 = vmatpush1.msra.mxu0 0.0
    %691 = vmatprep.subr.mxu0 0.0
    %692 = vmatpush1.msra.mxu0 0.0
    %693 = vmatprep.subr.mxu0 0.0
    %694 = vmatpush1.msra.mxu0 0.0
    %695 = vmatprep.subr.mxu0 0.0
    %696 = vmatpush1.msra.mxu0 0.0
    %697 = vmatprep.subr.mxu0 0.0
    %698 = vmatpush1.msra.mxu0 0.0
    %699 = vmatprep.mubr.f32.mxu0 0.0
    %700 = vmatmul.mubr.f32.gmra.mrb[0].mxu0 %v630
    %v701 = vpop.f32.mrb[0].mxu0
    %v702 = vadd.f32 0.0, %v701
    %v703 = vpop.f32.mrb[0].mxu0
    %704 = vmatprep.mubr.f32.mxu0 0.0
    %705 = vmatmul.mubr.f32.gmra.mrb[0].mxu0 %v633
    %v706 = vpop.f32.mrb[0].mxu0
    %v707 = vadd.f32 0.0, %v706
    %v708 = vpop.f32.mrb[0].mxu0
    %709 = vdwg.mxu0
    %710 = vmatprep.subr.mxu0 0.0
    %711 = vmatpush1.msra.mxu0 %v611
    %712 = vmatprep.subr.mxu0 0.0
    %713 = vmatpush1.msra.mxu0 %v612
    %714 = vmatprep.subr.mxu0 0.0
    %715 = vmatpush1.msra.mxu0 %v613
    %716 = vmatprep.subr.mxu0 0.0
    %717 = vmatpush1.msra.mxu0 %v614
    %718 = vmatprep.subr.mxu0 0.0
    %719 = vmatpush1.msra.mxu0 %v615
    %720 = vmatprep.subr.mxu0 0.0
    %721 = vmatpush1.msra.mxu0 %v616
    %722 = vmatprep.subr.mxu0 0.0
    %723 = vmatpush1.msra.mxu0 %v617
    %724 = vmatprep.subr.mxu0 0.0
    %725 = vmatpush1.msra.mxu0 %v618
    %726 = vmatprep.subr.mxu0 0.0
    %727 = vmatpush1.msra.mxu0 0.0
    %728 = vmatprep.subr.mxu0 0.0
    %729 = vmatpush1.msra.mxu0 0.0
    %730 = vmatprep.subr.mxu0 0.0
    %731 = vmatpush1.msra.mxu0 0.0
    %732 = vmatprep.subr.mxu0 0.0
    %733 = vmatpush1.msra.mxu0 0.0
    %734 = vmatprep.subr.mxu0 0.0
    %735 = vmatpush1.msra.mxu0 0.0
    %736 = vmatprep.subr.mxu0 0.0
    %737 = vmatpush1.msra.mxu0 0.0
    %738 = vmatprep.subr.mxu0 0.0
    %739 = vmatpush1.msra.mxu0 0.0
    %740 = vmatprep.subr.mxu0 0.0
    %741 = vmatpush1.msra.mxu0 0.0
    %742 = vmatprep.subr.mxu0 0.0
    %743 = vmatpush1.msra.mxu0 0.0
    %744 = vmatprep.subr.mxu0 0.0
    %745 = vmatpush1.msra.mxu0 0.0
    %746 = vmatprep.subr.mxu0 0.0
    %747 = vmatpush1.msra.mxu0 0.0
    %748 = vmatprep.subr.mxu0 0.0
    %749 = vmatpush1.msra.mxu0 0.0
    %750 = vmatprep.subr.mxu0 0.0
    %751 = vmatpush1.msra.mxu0 0.0
    %752 = vmatprep.subr.mxu0 0.0
    %753 = vmatpush1.msra.mxu0 0.0
    %754 = vmatprep.subr.mxu0 0.0
    %755 = vmatpush1.msra.mxu0 0.0
    %756 = vmatprep.subr.mxu0 0.0
    %757 = vmatpush1.msra.mxu0 0.0
    %758 = vmatprep.subr.mxu0 0.0
    %759 = vmatpush1.msra.mxu0 0.0
    %760 = vmatprep.subr.mxu0 0.0
    %761 = vmatpush1.msra.mxu0 0.0
    %762 = vmatprep.subr.mxu0 0.0
    %763 = vmatpush1.msra.mxu0 0.0
    %764 = vmatprep.subr.mxu0 0.0
    %765 = vmatpush1.msra.mxu0 0.0
    %766 = vmatprep.subr.mxu0 0.0
    %767 = vmatpush1.msra.mxu0 0.0
    %768 = vmatprep.subr.mxu0 0.0
    %769 = vmatpush1.msra.mxu0 0.0
    %770 = vmatprep.subr.mxu0 0.0
    %771 = vmatpush1.msra.mxu0 0.0
    %772 = vmatprep.subr.mxu0 0.0
    %773 = vmatpush1.msra.mxu0 0.0
    %774 = vmatprep.mubr.f32.mxu0 0.0
    %775 = vmatmul.mubr.f32.gmra.mrb[0].mxu0 %v303
    %v776 = vpop.f32.mrb[0].mxu0
    %v777 = vadd.f32 %v702, %v776
    %v778 = vpop.f32.mrb[0].mxu0
    %779 = vmatprep.mubr.f32.mxu0 0.0
    %780 = vmatmul.mubr.f32.gmra.mrb[0].mxu0 %v306
    %v781 = vpop.f32.mrb[0].mxu0
    %v782 = vadd.f32 %v707, %v781
    %v783 = vpop.f32.mrb[0].mxu0
    %784 = vdwg.mxu0
    %v785 = vld [vmem:[%s10] sm:$0x1]
    %v787 = vlaneseq
    %v788 = vshrl.u32 %v787, 7
    %v789 = vsub.s32 0, %v788
    %v790 = vrot.slane %v785, %v789
    %v792 = vadd.f32 %v777, %v790
    %v793 = vadd.f32 %v782, %v790
    %v794 = vmul.f32 %v792, 0.5
    %v795 = vmul.f32 %v793, 0.5
    %v796 = vmul.f32 %v792, 0.7978846
    %v797 = vmul.f32 %v793, 0.7978846
    %v798 = vmul.f32 %v792, 0.044715
    %v799 = vmul.f32 %v793, 0.044715
    %v800 = vmul.f32 %v798, %v792
    %v801 = vmul.f32 %v799, %v793
    %v802 = vadd.f32 %v800, 1.0
    %v803 = vadd.f32 %v801, 1.0
    %v804 = vmul.f32 %v796, %v802
    %v805 = vmul.f32 %v797, %v803
    %v806 = vtanh.pop %v804
    %v807 = vtanh.pop %v805
    %v808 = vadd.f32 %v806, 1.0
    %v809 = vadd.f32 %v807, 1.0
    %v810 = vmul.f32 %v794, %v808
    %v811 = vmul.f32 %v795, %v809
    %v812 = vld [vmem:[#allocation16] sm:$0xff]
    %v813 = vld [vmem:[#allocation16 + $0x8] sm:$0xff]
    %v814 = vld [vmem:[#allocation16 + $0x10] sm:$0xff]
    %v815 = vld [vmem:[#allocation16 + $0x18] sm:$0xff]
    %v816 = vld [vmem:[#allocation16 + $0x20] sm:$0xff]
    %v817 = vld [vmem:[#allocation16 + $0x28] sm:$0xff]
    %v818 = vld [vmem:[#allocation16 + $0x30] sm:$0xff]
    %v819 = vld [vmem:[#allocation16 + $0x38] sm:$0xff]
    %v820 = vld [vmem:[#allocation16 + $0x40] sm:$0xff]
    %v821 = vld [vmem:[#allocation16 + $0x48] sm:$0xff]
    %v822 = vld [vmem:[#allocation16 + $0x50] sm:$0xff]
    %v823 = vld [vmem:[#allocation16 + $0x58] sm:$0xff]
    %v824 = vld [vmem:[#allocation16 + $0x60] sm:$0xff]
    %v825 = vld [vmem:[#allocation16 + $0x68] sm:$0xff]
    %v826 = vld [vmem:[#allocation16 + $0x70] sm:$0xff]
    %v827 = vld [vmem:[#allocation16 + $0x78] sm:$0xff]
    %v828 = vld [vmem:[#allocation17] sm:$0xff]
    %v829 = vld [vmem:[#allocation17 + $0x8] sm:$0xff]
    %v830 = vld [vmem:[#allocation17 + $0x10] sm:$0xff]
    %v831 = vld [vmem:[#allocation17 + $0x18] sm:$0xff]
    %v832 = vld [vmem:[#allocation17 + $0x20] sm:$0xff]
    %v833 = vld [vmem:[#allocation17 + $0x28] sm:$0xff]
    %v834 = vld [vmem:[#allocation17 + $0x30] sm:$0xff]
    %v835 = vld [vmem:[#allocation17 + $0x38] sm:$0xff]
    %v836 = vld [vmem:[#allocation17 + $0x40] sm:$0xff]
    %v837 = vld [vmem:[#allocation17 + $0x48] sm:$0xff]
    %v838 = vld [vmem:[#allocation17 + $0x50] sm:$0xff]
    %v839 = vld [vmem:[#allocation17 + $0x58] sm:$0xff]
    %v840 = vld [vmem:[#allocation17 + $0x60] sm:$0xff]
    %v841 = vld [vmem:[#allocation17 + $0x68] sm:$0xff]
    %v842 = vld [vmem:[#allocation17 + $0x70] sm:$0xff]
    %v843 = vld [vmem:[#allocation17 + $0x78] sm:$0xff]
    %844 = vmatprep.subr.mxu0 0.0
    %845 = vmatpush1.msra.mxu0 %v828
    %846 = vmatprep.subr.mxu0 0.0
    %847 = vmatpush1.msra.mxu0 %v829
    %848 = vmatprep.subr.mxu0 0.0
    %849 = vmatpush1.msra.mxu0 %v830
    %850 = vmatprep.subr.mxu0 0.0
    %851 = vmatpush1.msra.mxu0 %v831
    %852 = vmatprep.subr.mxu0 0.0
    %853 = vmatpush1.msra.mxu0 %v832
    %854 = vmatprep.subr.mxu0 0.0
    %855 = vmatpush1.msra.mxu0 %v833
    %856 = vmatprep.subr.mxu0 0.0
    %857 = vmatpush1.msra.mxu0 %v834
    %858 = vmatprep.subr.mxu0 0.0
    %859 = vmatpush1.msra.mxu0 %v835
    %860 = vmatprep.subr.mxu0 0.0
    %861 = vmatpush1.msra.mxu0 %v836
    %862 = vmatprep.subr.mxu0 0.0
    %863 = vmatpush1.msra.mxu0 %v837
    %864 = vmatprep.subr.mxu0 0.0
    %865 = vmatpush1.msra.mxu0 %v838
    %866 = vmatprep.subr.mxu0 0.0
    %867 = vmatpush1.msra.mxu0 %v839
    %868 = vmatprep.subr.mxu0 0.0
    %869 = vmatpush1.msra.mxu0 %v840
    %870 = vmatprep.subr.mxu0 0.0
    %871 = vmatpush1.msra.mxu0 %v841
    %872 = vmatprep.subr.mxu0 0.0
    %873 = vmatpush1.msra.mxu0 %v842
    %874 = vmatprep.subr.mxu0 0.0
    %875 = vmatpush1.msra.mxu0 %v843
    %876 = vmatprep.subr.mxu0 0.0
    %877 = vmatpush1.msra.mxu0 0.0
    %878 = vmatprep.subr.mxu0 0.0
    %879 = vmatpush1.msra.mxu0 0.0
    %880 = vmatprep.subr.mxu0 0.0
    %881 = vmatpush1.msra.mxu0 0.0
    %882 = vmatprep.subr.mxu0 0.0
    %883 = vmatpush1.msra.mxu0 0.0
    %884 = vmatprep.subr.mxu0 0.0
    %885 = vmatpush1.msra.mxu0 0.0
    %886 = vmatprep.subr.mxu0 0.0
    %887 = vmatpush1.msra.mxu0 0.0
    %888 = vmatprep.subr.mxu0 0.0
    %889 = vmatpush1.msra.mxu0 0.0
    %890 = vmatprep.subr.mxu0 0.0
    %891 = vmatpush1.msra.mxu0 0.0
    %892 = vmatprep.subr.mxu0 0.0
    %893 = vmatpush1.msra.mxu0 0.0
    %894 = vmatprep.subr.mxu0 0.0
    %895 = vmatpush1.msra.mxu0 0.0
    %896 = vmatprep.subr.mxu0 0.0
    %897 = vmatpush1.msra.mxu0 0.0
    %898 = vmatprep.subr.mxu0 0.0
    %899 = vmatpush1.msra.mxu0 0.0
    %900 = vmatprep.subr.mxu0 0.0
    %901 = vmatpush1.msra.mxu0 0.0
    %902 = vmatprep.subr.mxu0 0.0
    %903 = vmatpush1.msra.mxu0 0.0
    %904 = vmatprep.subr.mxu0 0.0
    %905 = vmatpush1.msra.mxu0 0.0
    %906 = vmatprep.subr.mxu0 0.0
    %907 = vmatpush1.msra.mxu0 0.0
    %908 = vmatprep.mubr.f32.mxu0 0.0
    %909 = vmatmul.mubr.f32.gmra.mrb[0].mxu0 %v609
    %v910 = vpop.f32.mrb[0].mxu0
    %v911 = vadd.f32 0.0, %v910
    %v912 = vpop.f32.mrb[0].mxu0
    %913 = vmatprep.mubr.f32.mxu0 0.0
    %914 = vmatmul.mubr.f32.gmra.mrb[0].mxu0 %v610
    %v915 = vpop.f32.mrb[0].mxu0
    %v916 = vadd.f32 0.0, %v915
    %v917 = vpop.f32.mrb[0].mxu0
    %918 = vdwg.mxu0
    %919 = vmatprep.subr.mxu0 0.0
    %920 = vmatpush1.msra.mxu0 %v812
    %921 = vmatprep.subr.mxu0 0.0
    %922 = vmatpush1.msra.mxu0 %v813
    %923 = vmatprep.subr.mxu0 0.0
    %924 = vmatpush1.msra.mxu0 %v814
    %925 = vmatprep.subr.mxu0 0.0
    %926 = vmatpush1.msra.mxu0 %v815
    %927 = vmatprep.subr.mxu0 0.0
    %928 = vmatpush1.msra.mxu0 %v816
    %929 = vmatprep.subr.mxu0 0.0
    %930 = vmatpush1.msra.mxu0 %v817
    %931 = vmatprep.subr.mxu0 0.0
    %932 = vmatpush1.msra.mxu0 %v818
    %933 = vmatprep.subr.mxu0 0.0
    %934 = vmatpush1.msra.mxu0 %v819
    %935 = vmatprep.subr.mxu0 0.0
    %936 = vmatpush1.msra.mxu0 %v820
    %937 = vmatprep.subr.mxu0 0.0
    %938 = vmatpush1.msra.mxu0 %v821
    %939 = vmatprep.subr.mxu0 0.0
    %940 = vmatpush1.msra.mxu0 %v822
    %941 = vmatprep.subr.mxu0 0.0
    %942 = vmatpush1.msra.mxu0 %v823
    %943 = vmatprep.subr.mxu0 0.0
    %944 = vmatpush1.msra.mxu0 %v824
    %945 = vmatprep.subr.mxu0 0.0
    %946 = vmatpush1.msra.mxu0 %v825
    %947 = vmatprep.subr.mxu0 0.0
    %948 = vmatpush1.msra.mxu0 %v826
    %949 = vmatprep.subr.mxu0 0.0
    %950 = vmatpush1.msra.mxu0 %v827
    %951 = vmatprep.subr.mxu0 0.0
    %952 = vmatpush1.msra.mxu0 0.0
    %953 = vmatprep.subr.mxu0 0.0
    %954 = vmatpush1.msra.mxu0 0.0
    %955 = vmatprep.subr.mxu0 0.0
    %956 = vmatpush1.msra.mxu0 0.0
    %957 = vmatprep.subr.mxu0 0.0
    %958 = vmatpush1.msra.mxu0 0.0
    %959 = vmatprep.subr.mxu0 0.0
    %960 = vmatpush1.msra.mxu0 0.0
    %961 = vmatprep.subr.mxu0 0.0
    %962 = vmatpush1.msra.mxu0 0.0
    %963 = vmatprep.subr.mxu0 0.0
    %964 = vmatpush1.msra.mxu0 0.0
    %965 = vmatprep.subr.mxu0 0.0
    %966 = vmatpush1.msra.mxu0 0.0
    %967 = vmatprep.subr.mxu0 0.0
    %968 = vmatpush1.msra.mxu0 0.0
    %969 = vmatprep.subr.mxu0 0.0
    %970 = vmatpush1.msra.mxu0 0.0
    %971 = vmatprep.subr.mxu0 0.0
    %972 = vmatpush1.msra.mxu0 0.0
    %973 = vmatprep.subr.mxu0 0.0
    %974 = vmatpush1.msra.mxu0 0.0
    %975 = vmatprep.subr.mxu0 0.0
    %976 = vmatpush1.msra.mxu0 0.0
    %977 = vmatprep.subr.mxu0 0.0
    %978 = vmatpush1.msra.mxu0 0.0
    %979 = vmatprep.subr.mxu0 0.0
    %980 = vmatpush1.msra.mxu0 0.0
    %981 = vmatprep.subr.mxu0 0.0
    %982 = vmatpush1.msra.mxu0 0.0
    %983 = vmatprep.mubr.f32.mxu0 0.0
    %984 = vmatmul.mubr.f32.gmra.mrb[0].mxu0 %v408
    %v985 = vpop.f32.mrb[0].mxu0
    %v986 = vadd.f32 %v911, %v985
    %v987 = vpop.f32.mrb[0].mxu0
    %988 = vmatprep.mubr.f32.mxu0 0.0
    %989 = vmatmul.mubr.f32.gmra.mrb[0].mxu0 %v409
    %v990 = vpop.f32.mrb[0].mxu0
    %v991 = vadd.f32 %v916, %v990
    %v992 = vpop.f32.mrb[0].mxu0
    %993 = vdwg.mxu0
    %v994 = vld [vmem:[#allocation19] sm:$0xff]
    %v995 = vld [vmem:[#allocation19 + $0x8] sm:$0xff]
    %v996 = vld [vmem:[#allocation19 + $0x10] sm:$0xff]
    %v997 = vld [vmem:[#allocation19 + $0x18] sm:$0xff]
    %v998 = vld [vmem:[#allocation19 + $0x20] sm:$0xff]
    %v999 = vld [vmem:[#allocation19 + $0x28] sm:$0xff]
    %v1000 = vld [vmem:[#allocation19 + $0x30] sm:$0xff]
    %v1001 = vld [vmem:[#allocation19 + $0x38] sm:$0xff]
    %v1002 = vld [vmem:[#allocation19 + $0x40] sm:$0xff]
    %v1003 = vld [vmem:[#allocation19 + $0x48] sm:$0xff]
    %v1004 = vld [vmem:[#allocation19 + $0x50] sm:$0xff]
    %v1005 = vld [vmem:[#allocation19 + $0x58] sm:$0xff]
    %v1006 = vld [vmem:[#allocation19 + $0x60] sm:$0xff]
    %v1007 = vld [vmem:[#allocation19 + $0x68] sm:$0xff]
    %v1008 = vld [vmem:[#allocation19 + $0x70] sm:$0xff]
    %v1009 = vld [vmem:[#allocation19 + $0x78] sm:$0xff]
    %1010 = vmatprep.subr.mxu0 0.0
    %1011 = vmatpush1.msra.mxu0 %v994
    %1012 = vmatprep.subr.mxu0 0.0
    %1013 = vmatpush1.msra.mxu0 %v995
    %1014 = vmatprep.subr.mxu0 0.0
    %1015 = vmatpush1.msra.mxu0 %v996
    %1016 = vmatprep.subr.mxu0 0.0
    %1017 = vmatpush1.msra.mxu0 %v997
    %1018 = vmatprep.subr.mxu0 0.0
    %1019 = vmatpush1.msra.mxu0 %v998
    %1020 = vmatprep.subr.mxu0 0.0
    %1021 = vmatpush1.msra.mxu0 %v999
    %1022 = vmatprep.subr.mxu0 0.0
    %1023 = vmatpush1.msra.mxu0 %v1000
    %1024 = vmatprep.subr.mxu0 0.0
    %1025 = vmatpush1.msra.mxu0 %v1001
    %1026 = vmatprep.subr.mxu0 0.0
    %1027 = vmatpush1.msra.mxu0 %v1002
    %1028 = vmatprep.subr.mxu0 0.0
    %1029 = vmatpush1.msra.mxu0 %v1003
    %1030 = vmatprep.subr.mxu0 0.0
    %1031 = vmatpush1.msra.mxu0 %v1004
    %1032 = vmatprep.subr.mxu0 0.0
    %1033 = vmatpush1.msra.mxu0 %v1005
    %1034 = vmatprep.subr.mxu0 0.0
    %1035 = vmatpush1.msra.mxu0 %v1006
    %1036 = vmatprep.subr.mxu0 0.0
    %1037 = vmatpush1.msra.mxu0 %v1007
    %1038 = vmatprep.subr.mxu0 0.0
    %1039 = vmatpush1.msra.mxu0 %v1008
    %1040 = vmatprep.subr.mxu0 0.0
    %1041 = vmatpush1.msra.mxu0 %v1009
    %1042 = vmatprep.subr.mxu0 0.0
    %1043 = vmatpush1.msra.mxu0 0.0
    %1044 = vmatprep.subr.mxu0 0.0
    %1045 = vmatpush1.msra.mxu0 0.0
    %1046 = vmatprep.subr.mxu0 0.0
    %1047 = vmatpush1.msra.mxu0 0.0
    %1048 = vmatprep.subr.mxu0 0.0
    %1049 = vmatpush1.msra.mxu0 0.0
    %1050 = vmatprep.subr.mxu0 0.0
    %1051 = vmatpush1.msra.mxu0 0.0
    %1052 = vmatprep.subr.mxu0 0.0
    %1053 = vmatpush1.msra.mxu0 0.0
    %1054 = vmatprep.subr.mxu0 0.0
    %1055 = vmatpush1.msra.mxu0 0.0
    %1056 = vmatprep.subr.mxu0 0.0
    %1057 = vmatpush1.msra.mxu0 0.0
    %1058 = vmatprep.subr.mxu0 0.0
    %1059 = vmatpush1.msra.mxu0 0.0
    %1060 = vmatprep.subr.mxu0 0.0
    %1061 = vmatpush1.msra.mxu0 0.0
    %1062 = vmatprep.subr.mxu0 0.0
    %1063 = vmatpush1.msra.mxu0 0.0
    %1064 = vmatprep.subr.mxu0 0.0
    %1065 = vmatpush1.msra.mxu0 0.0
    %1066 = vmatprep.subr.mxu0 0.0
    %1067 = vmatpush1.msra.mxu0 0.0
    %1068 = vmatprep.subr.mxu0 0.0
    %1069 = vmatpush1.msra.mxu0 0.0
    %1070 = vmatprep.subr.mxu0 0.0
    %1071 = vmatpush1.msra.mxu0 0.0
    %1072 = vmatprep.subr.mxu0 0.0
    %1073 = vmatpush1.msra.mxu0 0.0
    %1074 = vmatprep.mubr.f32.mxu0 0.0
    %1075 = vmatmul.mubr.f32.gmra.mrb[0].mxu0 %v810
    %v1076 = vpop.f32.mrb[0].mxu0
    %v1077 = vadd.f32 0.0, %v1076
    %v1078 = vpop.f32.mrb[0].mxu0
    %1079 = vmatprep.mubr.f32.mxu0 0.0
    %1080 = vmatmul.mubr.f32.gmra.mrb[0].mxu0 %v811
    %v1081 = vpop.f32.mrb[0].mxu0
    %v1082 = vadd.f32 0.0, %v1081
    %v1083 = vpop.f32.mrb[0].mxu0
    %1084 = vdwg.mxu0
    %v1085 = vadd.f32 %v986, %v1077
    %v1086 = vadd.f32 %v991, %v1082
    %v1087 = vld [vmem:[%s14] sm:$0x1]
    %v1089 = vlaneseq
    %v1090 = vshrl.u32 %v1089, 7
    %v1091 = vsub.s32 0, %v1090
    %v1092 = vrot.slane %v1087, %v1091
    %v1094 = vadd.f32 %v1085, %v1092
    %v1095 = vadd.f32 %v1086, %v1092
    %v1096 = vmul.f32 %v1094, 0.5
    %v1097 = vmul.f32 %v1095, 0.5
    %v1098 = vmul.f32 %v1094, 0.7978846
    %v1099 = vmul.f32 %v1095, 0.7978846
    %v1100 = vmul.f32 %v1094, 0.044715
    %v1101 = vmul.f32 %v1095, 0.044715
    %v1102 = vmul.f32 %v1100, %v1094
    %v1103 = vmul.f32 %v1101, %v1095
    %v1104 = vadd.f32 %v1102, 1.0
    %v1105 = vadd.f32 %v1103, 1.0
    %v1106 = vmul.f32 %v1098, %v1104
    %v1107 = vmul.f32 %v1099, %v1105
    %v1108 = vtanh.pop %v1106
    %v1109 = vtanh.pop %v1107
    %v1110 = vadd.f32 %v1108, 1.0
    %v1111 = vadd.f32 %v1109, 1.0
    %v1112 = vmul.f32 %v1096, %v1110
    %v1113 = vmul.f32 %v1097, %v1111
    %1114 = vst [vmem:[#allocation20] sm:$0xff] %v1112
    %1115 = vst [vmem:[#allocation20 + $0x8] sm:$0xff] %v1113
    // Predicated region
    $region106: #{tpu_custom_call.1} parent=1 // pred_check
      _
    $region107: #{tpu_custom_call.1} parent=1 // pred_check_branch
      %1117 = sbr.rel (0) target = $region109
    $region108: #{tpu_custom_call.1} parent=1 // pred_region
      %s1119 = ssub.s32 256, 256
      %1120 = vsyncadd [#allocation4], %s1119
      %s1121 = sshll.u32 [#allocation20], 4
      %s1122 = int_to_ptr.vmem [resolvable:$true] %s1121
      %1127 = dma.vmem_to_hbm [thread:$0]  %s1122, 256, %s15, [#allocation4], 128, 128, 8
    $region109: #{tpu_custom_call.1} parent=1 // pred_fallthru
      _
    // Predicated region
    $region110: #{tpu_custom_call.1} parent=1 // pred_check
      _
    $region111: #{tpu_custom_call.1} parent=1 // pred_check_branch
      %1129 = sbr.rel (0) target = $region113
    $region112: #{tpu_custom_call.1} parent=1 // pred_region
      %1130 = dma.done [#allocation4], 256
    $region113: #{tpu_custom_call.1} parent=1 // pred_fallthru
      _
    %1131 = vsyncpa [#allocation3], 1
    %1132 = vsyncpa [#allocation6], 1
    %1133 = vsyncpa [#allocation9], 1
    %1134 = vsyncpa [#allocation12], 1
    %1135 = vsyncpa [#allocation15], 1
    %1136 = vsyncpa [#allocation18], 1
    %1137 = vsyncpa [#allocation4], 1

</llo_original>
